<compile_context>
chip_gen: v5e
topology: v5e:2x2
jax: 0.10.0
libtpu: 0.0.40
codegen_flags: <defaults>
</compile_context>

<pallas_src>
import jax
import jax.numpy as jnp
from jax import lax
from jax.experimental import pallas as pl
from jax.experimental.pallas import tpu as pltpu

INPUT_DIM = 23     # self.dim; embedding is Linear(23, embed_time)
EMBED_TIME = 16
NHIDDEN = 32

_MAX_UNROLL = 64   # fully unroll the recurrence when L <= this (and L*bt is small)
_MAX_BT = 128      # batch-tile ceiling


def _bigru_kernel(x_ref, w_in_ref, b_in_ref, w_hh_ref, bhh_n_ref, out_ref, gi_ref):
    """Fused bidirectional GRU over one batch tile.

    Per grid step:
      x_ref:     (L, B, 2*Din)  time-major input; lanes = [x_t | x_{L-1-t}]
      w_in_ref:  (2*Din, 6H)    embedding folded into both directions' W_ih, block-diagonal
                                over the doubled feature dim; column layout (gate-major,
                                dir-minor): [r_f r_b z_f z_b n_f n_b]
      b_in_ref:  (1, 6H)        bih (+ bhh for r,z gates) in the same layout (f32)
      w_hh_ref:  (2H, 6H)       block-diagonal recurrent weights, rows = [h_f | h_b]
      bhh_n_ref: (1, 2H)        recurrent n-gate bias, [n_f n_b] (f32)
      out_ref:   (L, B, 2H)     lanes = [h_fwd | h_bwd]
      gi_ref:    (L, B, 6H)     VMEM scratch of precomputed input-side gates; backward
                                columns are already time-reversed.
    """
    L, B, _ = x_ref.shape
    G = w_in_ref.shape[1]        # 6H
    H2 = w_hh_ref.shape[0]       # 2H
    H = H2 // 2
    H4 = 2 * H2                  # 4H (r|z block width)

    # ---- one fused input-side projection for both directions & all 3 gates ----
    # (bf16 MXU matmul, f32 accumulation; biases added in f32)
    # NOTE: the reshape merges leading (non-lane) axes only; cheap relative to the matmul.
    x2 = x_ref[...].reshape(L * B, x_ref.shape[2])
    gi = jnp.dot(x2, w_in_ref[...], preferred_element_type=jnp.float32) + b_in_ref[...]
    gi_ref[...] = gi.reshape(L, B, G)

    w_hh = w_hh_ref[...]                                   # (2H, 6H), bf16 (or f32)
    bhh_n = jnp.broadcast_to(bhh_n_ref[...], (B, H2))      # hoisted broadcast

    # TODO(synk): keep w_hh resident in the MXU weight staging across the time loop via
    # pltpu.matmul_push_rhs / matmul_acc_lhs / matmul_pop to remove the per-step RHS push
    # from the serial critical path.

    def step(t, h):              # h: (B, 2H) f32 = [h_f | h_b]
        rt = L - 1 - t
        gi_t = gi_ref[t]         # backward-direction columns already time-reversed
        gh = jnp.dot(h.astype(w_hh.dtype), w_hh, preferred_element_type=jnp.float32)
        # fused r|z sigmoid over one contiguous 128-lane block (2 EUP pushes/step)
        rz = jax.nn.sigmoid(gi_t[:, 0:H4] + gh[:, 0:H4])
        r = rz[:, 0:H2]
        z = rz[:, H2:H4]
        n = jnp.tanh(gi_t[:, H4:] + r * (gh[:, H4:] + bhh_n))
        h = (1.0 - z) * n + z * h
        out_ref[t, :, 0:H] = h[:, 0:H]        # forward hidden at time t
        out_ref[rt, :, H:H2] = h[:, H:H2]     # backward hidden at time L-1-t
        return h

    h0 = jnp.zeros((B, H2), dtype=jnp.float32)
    if L <= _MAX_UNROLL and L * B <= 4096:
        # static full unroll: both dependency chains visible to the LLO scheduler
        h = h0
        for t in range(L):
            h = step(t, h)
    else:
        # partial unroll: lets step t+1 loads/stores overlap step t's MXU/EUP chain
        # without unbounded vreg live ranges at large batch tiles.
        lax.fori_loop(0, L, step, h0, unroll=4)
        # TODO(synk): for production L, stream gi/out in L-chunks (extra 'arbitrary' grid
        # axis, h carried in a persistent VMEM scratch) instead of keeping the full
        # (L, bt, 6H) gi resident — v7x has only 64 MiB physical VMEM.


def _fuse_params(params, nhidden, matmul_dtype):
    """Host-side weight fusion into the gate-major / direction-minor kernel layout."""
    H = nhidden
    G = 6 * H

    def gate_major(a_f, a_b):
        # a_f, a_b: (..., 3H) in PyTorch gate order [r z n] -> (..., 6H)
        # layout [r_f r_b z_f z_b n_f n_b]
        parts = []
        for g in range(3):
            parts.append(a_f[..., g * H:(g + 1) * H])
            parts.append(a_b[..., g * H:(g + 1) * H])
        return jnp.concatenate(parts, axis=-1)

    wih_cat = gate_major(params["wih_f"].T, params["wih_b"].T)            # (E, 6H)
    w_full = (params["w_emb"].T @ wih_cat).astype(jnp.float32)            # (Din, 6H)
    # Block-diagonalize over a doubled feature dim: the first Din rows feed the forward
    # gate columns, the last Din rows feed the backward gate columns.  The kernel's x is
    # [x_t | x_{L-1-t}], so a single matmul yields pre-time-reversed backward gates.
    fwd_cols = ((jnp.arange(G) // H) % 2 == 0).astype(jnp.float32)[None, :]
    w_in = jnp.concatenate([w_full * fwd_cols, w_full * (1.0 - fwd_cols)],
                           axis=0).astype(matmul_dtype)                   # (2*Din, 6H)

    bih_cat = gate_major(params["bih_f"][None, :], params["bih_b"][None, :])
    bhh_cat = gate_major(params["bhh_f"][None, :], params["bhh_b"][None, :])
    rz_mask = (jnp.arange(G) < 4 * H).astype(jnp.float32)[None, :]
    b_in = (bih_cat + bhh_cat * rz_mask).astype(jnp.float32)              # (1, 6H)
    bhh_n = jnp.concatenate(
        [params["bhh_f"][2 * H:], params["bhh_b"][2 * H:]])[None, :].astype(jnp.float32)

    zH = jnp.zeros((H, H), jnp.float32)
    wf, wb = params["whh_f"].T, params["whh_b"].T                         # (H, 3H)
    w_hh = jnp.concatenate([
        jnp.concatenate([wf[:, 0:H], zH, wf[:, H:2 * H], zH, wf[:, 2 * H:], zH], axis=1),
        jnp.concatenate([zH, wb[:, 0:H], zH, wb[:, H:2 * H], zH, wb[:, 2 * H:]], axis=1),
    ], axis=0).astype(matmul_dtype)                                       # (2H, 6H)

    return w_in, b_in, w_hh, bhh_n


def _pick_bt(B):
    """Batch tile: as large as possible (the serial GRU step is latency-bound, batch rows
    ride the MXU sublanes ~for free), a multiple of 16 (or == B) so the BlockSpec sublane
    dim stays legal for bf16 blocks, and nb >= 2 when B is large enough so the 'parallel'
    grid axis can shard across 2 TensorCores on v7x."""
    if B <= _MAX_BT:
        if B >= 64 and B % 32 == 0:
            return B // 2          # nb == 2 -> v7x megacore sharding, tiles stay >= 32 rows
        return B
    for bt in range(_MAX_BT, 15, -16):
        if B % bt == 0:
            return bt
    return B                        # fallback: single full-batch tile (always legal)


def enc_mtan_gru_withoutirr_forward(x, time_steps, params,
                                    input_dim=INPUT_DIM, nhidden=NHIDDEN,
                                    matmul_dtype=jnp.bfloat16):
    del time_steps  # the PyTorch forward ignores time_steps / causal_mask
    B, L, _ = x.shape
    H = nhidden
    H2, G = 2 * H, 6 * H

    x_tm = jnp.transpose(x[:, :, :input_dim].astype(jnp.float32), (1, 0, 2))   # (L,B,Din)
    # Concatenate a time-flipped copy along features: with the block-diagonal w_in this
    # gives both directions' (pre-reversed) input gates from ONE matmul; K=46 still fits a
    # single MXU pass, so the extra FLOPs are free.
    x_cat = jnp.concatenate([x_tm, x_tm[::-1]], axis=-1).astype(matmul_dtype)  # (L,B,2Din)

    w_in, b_in, w_hh, bhh_n = _fuse_params(params, nhidden, matmul_dtype)

    bt = _pick_bt(B)
    nb = pl.cdiv(B, bt)

    # VMEM budget: gi scratch + double-buffered x/out blocks + weights (with headroom)
    itm = jnp.dtype(matmul_dtype).itemsize
    vmem_need = (L * bt * G * 4                       # gi scratch (f32)
                 + 2 * L * bt * (2 * input_dim) * itm  # x block, double-buffered
                 + 2 * L * bt * H2 * 4                 # out block, double-buffered
                 + 2 * (w_in.size * itm + w_hh.size * itm + b_in.size * 4 + bhh_n.size * 4))
    vmem_limit = int(min(max(32 * 1024 * 1024, 2 * vmem_need), 64 * 1024 * 1024))

    def full2(a):
        return pl.BlockSpec(a.shape, lambda b: (0, 0))

    out = pl.pallas_call(
        _bigru_kernel,
        out_shape=jax.ShapeDtypeStruct((L, B, H2), jnp.float32),
        grid=(nb,),
        in_specs=[
            pl.BlockSpec((L, bt, 2 * input_dim), lambda b: (0, b, 0)),
            full2(w_in), full2(b_in), full2(w_hh), full2(bhh_n),
        ],
        out_specs=pl.BlockSpec((L, bt, H2), lambda b: (0, b, 0)),
        scratch_shapes=[pltpu.VMEM((L, bt, G), jnp.float32)],
        compiler_params=pltpu.CompilerParams(
            dimension_semantics=("parallel",),
            vmem_limit_bytes=vmem_limit,
        ),
    )(x_cat, w_in, b_in, w_hh, bhh_n)

    return jnp.transpose(out, (1, 0, 2))     # (B, L, 2H) batch-first


def init_params(key, input_dim=INPUT_DIM, embed_time=EMBED_TIME, nhidden=NHIDDEN):
    """Deterministic synthetic params with PyTorch shapes (Linear / GRU)."""
    E, H = embed_time, nhidden
    ks = jax.random.split(key, 9)

    def u(k, shape, fan):
        bound = 1.0 / (float(fan) ** 0.5)
        return jax.random.uniform(k, shape, jnp.float32, -bound, bound)

    return dict(
        w_emb=u(ks[0], (E, input_dim), input_dim),   # nn.Linear(23, E, bias=False).weight
        wih_f=u(ks[1], (3 * H, E), H),               # GRU weight_ih_l0
        whh_f=u(ks[2], (3 * H, H), H),               # GRU weight_hh_l0
        bih_f=u(ks[3], (3 * H,), H),
        bhh_f=u(ks[4], (3 * H,), H),
        wih_b=u(ks[5], (3 * H, E), H),               # reverse direction
        whh_b=u(ks[6], (3 * H, H), H),
        bih_b=u(ks[7], (3 * H,), H),
        bhh_b=u(ks[8], (3 * H,), H),
    )


def reference_forward(x, params, input_dim=INPUT_DIM, nhidden=NHIDDEN):
    """Pure-JAX reference (PyTorch bidirectional GRU semantics, full f32)."""
    H = nhidden
    emb = jnp.einsum("bld,ed->ble", x[:, :, :input_dim].astype(jnp.float32), params["w_emb"])

    def run_dir(wih, whh, bih, bhh, reverse):
        def step(h, e_t):
            gi = e_t @ wih.T + bih
            gh = h @ whh.T + bhh
            r = jax.nn.sigmoid(gi[:, :H] + gh[:, :H])
            z = jax.nn.sigmoid(gi[:, H:2 * H] + gh[:, H:2 * H])
            n = jnp.tanh(gi[:, 2 * H:] + r * gh[:, 2 * H:])
            h = (1.0 - z) * n + z * h
            return h, h
        xs = jnp.transpose(emb, (1, 0, 2))
        if reverse:
            xs = xs[::-1]
        h0 = jnp.zeros((emb.shape[0], H), jnp.float32)
        _, hs = lax.scan(step, h0, xs)
        if reverse:
            hs = hs[::-1]
        return jnp.transpose(hs, (1, 0, 2))

    f = run_dir(params["wih_f"], params["whh_f"], params["bih_f"], params["bhh_f"], False)
    b = run_dir(params["wih_b"], params["whh_b"], params["bih_b"], params["bhh_b"], True)
    return jnp.concatenate([f, b], axis=-1)


if __name__ == "__main__":
    key = jax.random.PRNGKey(0)
    kx, kt, kp = jax.random.split(key, 3)

    B, L, F = 2, 8, 25          # x has >= 23 features; forward slices x[:, :, :23]
    x = jax.random.normal(kx, (B, L, F), jnp.float32)
    time_steps = jax.random.uniform(kt, (B, L), jnp.float32)   # unused by forward
    params = init_params(kp)

    ref = reference_forward(x, params)

    # fast path: bf16 MXU matmuls (f32 accumulation) — loose tolerance vs f32 reference
    out = enc_mtan_gru_withoutirr_forward(x, time_steps, params)
    out = jax.block_until_ready(out)
    assert out.shape == (B, L, 2 * NHIDDEN), out.shape
    assert jnp.allclose(out, ref, atol=5e-2, rtol=5e-2), "bf16 kernel mismatch vs reference"

    # exact-math check: same kernel with f32 matmul operands, tight tolerance
    out_f32 = enc_mtan_gru_withoutirr_forward(x, time_steps, params,
                                              matmul_dtype=jnp.float32)
    out_f32 = jax.block_until_ready(out_f32)
    assert jnp.allclose(out_f32, ref, atol=1e-4, rtol=1e-4), "f32 kernel mismatch vs reference"

    print("KERNEL_OK")
</pallas_src>

<mosaic_0001>
module attributes {stable_mosaic.version = 11 : i64} {
  func.func @_bigru_kernel(%arg0: i32, %arg1: memref<8x2x46xbf16, #tpu.memory_space<vmem>>, %arg2: memref<46x192xbf16, #tpu.memory_space<vmem>>, %arg3: memref<1x192xf32, #tpu.memory_space<vmem>>, %arg4: memref<64x192xbf16, #tpu.memory_space<vmem>>, %arg5: memref<1x64xf32, #tpu.memory_space<vmem>>, %arg6: memref<8x2x64xf32, #tpu.memory_space<vmem>>, %arg7: memref<8x2x192xf32, #tpu.memory_space<vmem>>) attributes {dimension_semantics = [#tpu.dimension_semantics<parallel>], iteration_bounds = array<i64: 1>, scalar_prefetch = 0 : i64, scratch_operands = 1 : i64, tpu.core_type = #tpu.core_type<tc>, window_params = [{transform_indices = @transform_0, window_bounds = array<i64: 8, 2, 46>}, {pipeline_mode = #tpu.pipeline_mode<synchronous>, transform_indices = @transform_1, window_bounds = array<i64: 46, 192>}, {pipeline_mode = #tpu.pipeline_mode<synchronous>, transform_indices = @transform_2, window_bounds = array<i64: 1, 192>}, {pipeline_mode = #tpu.pipeline_mode<synchronous>, transform_indices = @transform_3, window_bounds = array<i64: 64, 192>}, {pipeline_mode = #tpu.pipeline_mode<synchronous>, transform_indices = @transform_4, window_bounds = array<i64: 1, 64>}, {transform_indices = @transform_5, window_bounds = array<i64: 8, 2, 64>}]} {
    %c0 = arith.constant 0 : index
    %c0_0 = arith.constant 0 : index
    %c0_1 = arith.constant 0 : index
    %0 = vector.load %arg1[%c0, %c0_0, %c0_1] : memref<8x2x46xbf16, #tpu.memory_space<vmem>>, vector<8x2x46xbf16>
    %1 = vector.shape_cast %0 : vector<8x2x46xbf16> to vector<16x46xbf16>
    %c0_2 = arith.constant 0 : index
    %c0_3 = arith.constant 0 : index
    %2 = vector.load %arg2[%c0_2, %c0_3] : memref<46x192xbf16, #tpu.memory_space<vmem>>, vector<46x192xbf16>
    %cst = arith.constant dense<0.000000e+00> : vector<16x192xf32>
    %3 = tpu.matmul %1, %2, %cst {dimension_numbers = #tpu.dot_dimension_numbers<[1], [0], [0], [1], [0, 0, 1, 1], [], []>} : vector<16x46xbf16>, vector<46x192xbf16>, vector<16x192xf32> -> vector<16x192xf32>
    %c0_4 = arith.constant 0 : index
    %c0_5 = arith.constant 0 : index
    %4 = vector.load %arg3[%c0_4, %c0_5] : memref<1x192xf32, #tpu.memory_space<vmem>>, vector<1x192xf32>
    %5 = vector.broadcast %4 : vector<1x192xf32> to vector<16x192xf32>
    %6 = arith.addf %3, %5 : vector<16x192xf32>
    %7 = vector.shape_cast %6 : vector<16x192xf32> to vector<8x2x192xf32>
    %c0_6 = arith.constant 0 : index
    %c0_7 = arith.constant 0 : index
    %c0_8 = arith.constant 0 : index
    %8 = vector.load %arg7[%c0_6, %c0_7, %c0_8] : memref<8x2x192xf32, #tpu.memory_space<vmem>>, vector<8x2x192xf32>
    tpu.vector_store %arg7[%c0_6, %c0_7, %c0_8], %7 {strides = array<i32>} : memref<8x2x192xf32, #tpu.memory_space<vmem>>, vector<8x2x192xf32>,
    %c0_9 = arith.constant 0 : index
    %c0_10 = arith.constant 0 : index
    %9 = vector.load %arg4[%c0_9, %c0_10] : memref<64x192xbf16, #tpu.memory_space<vmem>>, vector<64x192xbf16>
    %c0_11 = arith.constant 0 : index
    %c0_12 = arith.constant 0 : index
    %10 = vector.load %arg5[%c0_11, %c0_12] : memref<1x64xf32, #tpu.memory_space<vmem>>, vector<1x64xf32>
    %11 = vector.shape_cast %10 : vector<1x64xf32> to vector<1x64xf32>
    %12 = vector.broadcast %11 : vector<1x64xf32> to vector<2x64xf32>
    %cst_13 = arith.constant 0.000000e+00 : f32
    %13 = vector.broadcast %cst_13 : f32 to vector<2x64xf32>
    %c0_14 = arith.constant 0 : index
    %c0_15 = arith.constant 0 : index
    %c0_16 = arith.constant 0 : index
    %14 = vector.load %arg7[%c0_14, %c0_15, %c0_16] : memref<8x2x192xf32, #tpu.memory_space<vmem>>, vector<1x2x192xf32>
    %15 = vector.shape_cast %14 : vector<1x2x192xf32> to vector<2x192xf32>
    %16 = arith.truncf %13 : vector<2x64xf32> to vector<2x64xbf16>
    %cst_17 = arith.constant dense<0.000000e+00> : vector<2x192xf32>
    %17 = tpu.matmul %16, %9, %cst_17 {dimension_numbers = #tpu.dot_dimension_numbers<[1], [0], [0], [1], [0, 0, 1, 1], [], []>} : vector<2x64xbf16>, vector<64x192xbf16>, vector<2x192xf32> -> vector<2x192xf32>
    %18 = vector.extract_strided_slice %15 {offsets = [0, 0], sizes = [2, 128], strides = [1, 1]} : vector<2x192xf32> to vector<2x128xf32>
    %19 = vector.extract_strided_slice %17 {offsets = [0, 0], sizes = [2, 128], strides = [1, 1]} : vector<2x192xf32> to vector<2x128xf32>
    %20 = arith.addf %18, %19 : vector<2x128xf32>
    %21 = arith.negf %20 : vector<2x128xf32>
    %22 = math.exp %21 : vector<2x128xf32>
    %cst_18 = arith.constant 1.000000e+00 : f32
    %23 = vector.broadcast %cst_18 : f32 to vector<2x128xf32>
    %24 = arith.addf %23, %22 : vector<2x128xf32>
    %25 = arith.divf %23, %24 : vector<2x128xf32>
    %26 = vector.extract_strided_slice %25 {offsets = [0, 0], sizes = [2, 64], strides = [1, 1]} : vector<2x128xf32> to vector<2x64xf32>
    %27 = vector.extract_strided_slice %25 {offsets = [0, 64], sizes = [2, 64], strides = [1, 1]} : vector<2x128xf32> to vector<2x64xf32>
    %28 = vector.extract_strided_slice %15 {offsets = [0, 128], sizes = [2, 64], strides = [1, 1]} : vector<2x192xf32> to vector<2x64xf32>
    %29 = vector.extract_strided_slice %17 {offsets = [0, 128], sizes = [2, 64], strides = [1, 1]} : vector<2x192xf32> to vector<2x64xf32>
    %30 = arith.addf %29, %12 : vector<2x64xf32>
    %31 = arith.mulf %26, %30 : vector<2x64xf32>
    %32 = arith.addf %28, %31 : vector<2x64xf32>
    %33 = math.tanh %32 : vector<2x64xf32>
    %cst_19 = arith.constant 1.000000e+00 : f32
    %34 = vector.broadcast %cst_19 : f32 to vector<2x64xf32>
    %35 = arith.subf %34, %27 : vector<2x64xf32>
    %36 = arith.mulf %35, %33 : vector<2x64xf32>
    %37 = arith.mulf %27, %13 : vector<2x64xf32>
    %38 = arith.addf %36, %37 : vector<2x64xf32>
    %39 = vector.extract_strided_slice %38 {offsets = [0, 0], sizes = [2, 32], strides = [1, 1]} : vector<2x64xf32> to vector<2x32xf32>
    %c0_20 = arith.constant 0 : index
    %c0_21 = arith.constant 0 : index
    %c0_22 = arith.constant 0 : index
    %40 = vector.load %arg6[%c0_20, %c0_21, %c0_22] : memref<8x2x64xf32, #tpu.memory_space<vmem>>, vector<1x2x32xf32>
    %41 = vector.shape_cast %40 : vector<1x2x32xf32> to vector<2x32xf32>
    %42 = vector.shape_cast %39 : vector<2x32xf32> to vector<1x2x32xf32>
    tpu.vector_store %arg6[%c0_20, %c0_21, %c0_22], %42 {strides = array<i32>} : memref<8x2x64xf32, #tpu.memory_space<vmem>>, vector<1x2x32xf32>,
    %43 = vector.extract_strided_slice %38 {offsets = [0, 32], sizes = [2, 32], strides = [1, 1]} : vector<2x64xf32> to vector<2x32xf32>
    %c7 = arith.constant 7 : index
    %c0_23 = arith.constant 0 : index
    %c32 = arith.constant 32 : index
    %44 = vector.load %arg6[%c7, %c0_23, %c32] : memref<8x2x64xf32, #tpu.memory_space<vmem>>, vector<1x2x32xf32>
    %45 = vector.shape_cast %44 : vector<1x2x32xf32> to vector<2x32xf32>
    %46 = vector.shape_cast %43 : vector<2x32xf32> to vector<1x2x32xf32>
    tpu.vector_store %arg6[%c7, %c0_23, %c32], %46 {strides = array<i32>} : memref<8x2x64xf32, #tpu.memory_space<vmem>>, vector<1x2x32xf32>,
    %c1 = arith.constant 1 : index
    %c0_24 = arith.constant 0 : index
    %c0_25 = arith.constant 0 : index
    %47 = vector.load %arg7[%c1, %c0_24, %c0_25] : memref<8x2x192xf32, #tpu.memory_space<vmem>>, vector<1x2x192xf32>
    %48 = vector.shape_cast %47 : vector<1x2x192xf32> to vector<2x192xf32>
    %49 = arith.truncf %38 : vector<2x64xf32> to vector<2x64xbf16>
    %cst_26 = arith.constant dense<0.000000e+00> : vector<2x192xf32>
    %50 = tpu.matmul %49, %9, %cst_26 {dimension_numbers = #tpu.dot_dimension_numbers<[1], [0], [0], [1], [0, 0, 1, 1], [], []>} : vector<2x64xbf16>, vector<64x192xbf16>, vector<2x192xf32> -> vector<2x192xf32>
    %51 = vector.extract_strided_slice %48 {offsets = [0, 0], sizes = [2, 128], strides = [1, 1]} : vector<2x192xf32> to vector<2x128xf32>
    %52 = vector.extract_strided_slice %50 {offsets = [0, 0], sizes = [2, 128], strides = [1, 1]} : vector<2x192xf32> to vector<2x128xf32>
    %53 = arith.addf %51, %52 : vector<2x128xf32>
    %54 = arith.negf %53 : vector<2x128xf32>
    %55 = math.exp %54 : vector<2x128xf32>
    %cst_27 = arith.constant 1.000000e+00 : f32
    %56 = vector.broadcast %cst_27 : f32 to vector<2x128xf32>
    %57 = arith.addf %56, %55 : vector<2x128xf32>
    %58 = arith.divf %56, %57 : vector<2x128xf32>
    %59 = vector.extract_strided_slice %58 {offsets = [0, 0], sizes = [2, 64], strides = [1, 1]} : vector<2x128xf32> to vector<2x64xf32>
    %60 = vector.extract_strided_slice %58 {offsets = [0, 64], sizes = [2, 64], strides = [1, 1]} : vector<2x128xf32> to vector<2x64xf32>
    %61 = vector.extract_strided_slice %48 {offsets = [0, 128], sizes = [2, 64], strides = [1, 1]} : vector<2x192xf32> to vector<2x64xf32>
    %62 = vector.extract_strided_slice %50 {offsets = [0, 128], sizes = [2, 64], strides = [1, 1]} : vector<2x192xf32> to vector<2x64xf32>
    %63 = arith.addf %62, %12 : vector<2x64xf32>
    %64 = arith.mulf %59, %63 : vector<2x64xf32>
    %65 = arith.addf %61, %64 : vector<2x64xf32>
    %66 = math.tanh %65 : vector<2x64xf32>
    %cst_28 = arith.constant 1.000000e+00 : f32
    %67 = vector.broadcast %cst_28 : f32 to vector<2x64xf32>
    %68 = arith.subf %67, %60 : vector<2x64xf32>
    %69 = arith.mulf %68, %66 : vector<2x64xf32>
    %70 = arith.mulf %60, %38 : vector<2x64xf32>
    %71 = arith.addf %69, %70 : vector<2x64xf32>
    %72 = vector.extract_strided_slice %71 {offsets = [0, 0], sizes = [2, 32], strides = [1, 1]} : vector<2x64xf32> to vector<2x32xf32>
    %c1_29 = arith.constant 1 : index
    %c0_30 = arith.constant 0 : index
    %c0_31 = arith.constant 0 : index
    %73 = vector.load %arg6[%c1_29, %c0_30, %c0_31] : memref<8x2x64xf32, #tpu.memory_space<vmem>>, vector<1x2x32xf32>
    %74 = vector.shape_cast %73 : vector<1x2x32xf32> to vector<2x32xf32>
    %75 = vector.shape_cast %72 : vector<2x32xf32> to vector<1x2x32xf32>
    tpu.vector_store %arg6[%c1_29, %c0_30, %c0_31], %75 {strides = array<i32>} : memref<8x2x64xf32, #tpu.memory_space<vmem>>, vector<1x2x32xf32>,
    %76 = vector.extract_strided_slice %71 {offsets = [0, 32], sizes = [2, 32], strides = [1, 1]} : vector<2x64xf32> to vector<2x32xf32>
    %c6 = arith.constant 6 : index
    %c0_32 = arith.constant 0 : index
    %c32_33 = arith.constant 32 : index
    %77 = vector.load %arg6[%c6, %c0_32, %c32_33] : memref<8x2x64xf32, #tpu.memory_space<vmem>>, vector<1x2x32xf32>
    %78 = vector.shape_cast %77 : vector<1x2x32xf32> to vector<2x32xf32>
    %79 = vector.shape_cast %76 : vector<2x32xf32> to vector<1x2x32xf32>
    tpu.vector_store %arg6[%c6, %c0_32, %c32_33], %79 {strides = array<i32>} : memref<8x2x64xf32, #tpu.memory_space<vmem>>, vector<1x2x32xf32>,
    %c2 = arith.constant 2 : index
    %c0_34 = arith.constant 0 : index
    %c0_35 = arith.constant 0 : index
    %80 = vector.load %arg7[%c2, %c0_34, %c0_35] : memref<8x2x192xf32, #tpu.memory_space<vmem>>, vector<1x2x192xf32>
    %81 = vector.shape_cast %80 : vector<1x2x192xf32> to vector<2x192xf32>
    %82 = arith.truncf %71 : vector<2x64xf32> to vector<2x64xbf16>
    %cst_36 = arith.constant dense<0.000000e+00> : vector<2x192xf32>
    %83 = tpu.matmul %82, %9, %cst_36 {dimension_numbers = #tpu.dot_dimension_numbers<[1], [0], [0], [1], [0, 0, 1, 1], [], []>} : vector<2x64xbf16>, vector<64x192xbf16>, vector<2x192xf32> -> vector<2x192xf32>
    %84 = vector.extract_strided_slice %81 {offsets = [0, 0], sizes = [2, 128], strides = [1, 1]} : vector<2x192xf32> to vector<2x128xf32>
    %85 = vector.extract_strided_slice %83 {offsets = [0, 0], sizes = [2, 128], strides = [1, 1]} : vector<2x192xf32> to vector<2x128xf32>
    %86 = arith.addf %84, %85 : vector<2x128xf32>
    %87 = arith.negf %86 : vector<2x128xf32>
    %88 = math.exp %87 : vector<2x128xf32>
    %cst_37 = arith.constant 1.000000e+00 : f32
    %89 = vector.broadcast %cst_37 : f32 to vector<2x128xf32>
    %90 = arith.addf %89, %88 : vector<2x128xf32>
    %91 = arith.divf %89, %90 : vector<2x128xf32>
    %92 = vector.extract_strided_slice %91 {offsets = [0, 0], sizes = [2, 64], strides = [1, 1]} : vector<2x128xf32> to vector<2x64xf32>
    %93 = vector.extract_strided_slice %91 {offsets = [0, 64], sizes = [2, 64], strides = [1, 1]} : vector<2x128xf32> to vector<2x64xf32>
    %94 = vector.extract_strided_slice %81 {offsets = [0, 128], sizes = [2, 64], strides = [1, 1]} : vector<2x192xf32> to vector<2x64xf32>
    %95 = vector.extract_strided_slice %83 {offsets = [0, 128], sizes = [2, 64], strides = [1, 1]} : vector<2x192xf32> to vector<2x64xf32>
    %96 = arith.addf %95, %12 : vector<2x64xf32>
    %97 = arith.mulf %92, %96 : vector<2x64xf32>
    %98 = arith.addf %94, %97 : vector<2x64xf32>
    %99 = math.tanh %98 : vector<2x64xf32>
    %cst_38 = arith.constant 1.000000e+00 : f32
    %100 = vector.broadcast %cst_38 : f32 to vector<2x64xf32>
    %101 = arith.subf %100, %93 : vector<2x64xf32>
    %102 = arith.mulf %101, %99 : vector<2x64xf32>
    %103 = arith.mulf %93, %71 : vector<2x64xf32>
    %104 = arith.addf %102, %103 : vector<2x64xf32>
    %105 = vector.extract_strided_slice %104 {offsets = [0, 0], sizes = [2, 32], strides = [1, 1]} : vector<2x64xf32> to vector<2x32xf32>
    %c2_39 = arith.constant 2 : index
    %c0_40 = arith.constant 0 : index
    %c0_41 = arith.constant 0 : index
    %106 = vector.load %arg6[%c2_39, %c0_40, %c0_41] : memref<8x2x64xf32, #tpu.memory_space<vmem>>, vector<1x2x32xf32>
    %107 = vector.shape_cast %106 : vector<1x2x32xf32> to vector<2x32xf32>
    %108 = vector.shape_cast %105 : vector<2x32xf32> to vector<1x2x32xf32>
    tpu.vector_store %arg6[%c2_39, %c0_40, %c0_41], %108 {strides = array<i32>} : memref<8x2x64xf32, #tpu.memory_space<vmem>>, vector<1x2x32xf32>,
    %109 = vector.extract_strided_slice %104 {offsets = [0, 32], sizes = [2, 32], strides = [1, 1]} : vector<2x64xf32> to vector<2x32xf32>
    %c5 = arith.constant 5 : index
    %c0_42 = arith.constant 0 : index
    %c32_43 = arith.constant 32 : index
    %110 = vector.load %arg6[%c5, %c0_42, %c32_43] : memref<8x2x64xf32, #tpu.memory_space<vmem>>, vector<1x2x32xf32>
    %111 = vector.shape_cast %110 : vector<1x2x32xf32> to vector<2x32xf32>
    %112 = vector.shape_cast %109 : vector<2x32xf32> to vector<1x2x32xf32>
    tpu.vector_store %arg6[%c5, %c0_42, %c32_43], %112 {strides = array<i32>} : memref<8x2x64xf32, #tpu.memory_space<vmem>>, vector<1x2x32xf32>,
    %c3 = arith.constant 3 : index
    %c0_44 = arith.constant 0 : index
    %c0_45 = arith.constant 0 : index
    %113 = vector.load %arg7[%c3, %c0_44, %c0_45] : memref<8x2x192xf32, #tpu.memory_space<vmem>>, vector<1x2x192xf32>
    %114 = vector.shape_cast %113 : vector<1x2x192xf32> to vector<2x192xf32>
    %115 = arith.truncf %104 : vector<2x64xf32> to vector<2x64xbf16>
    %cst_46 = arith.constant dense<0.000000e+00> : vector<2x192xf32>
    %116 = tpu.matmul %115, %9, %cst_46 {dimension_numbers = #tpu.dot_dimension_numbers<[1], [0], [0], [1], [0, 0, 1, 1], [], []>} : vector<2x64xbf16>, vector<64x192xbf16>, vector<2x192xf32> -> vector<2x192xf32>
    %117 = vector.extract_strided_slice %114 {offsets = [0, 0], sizes = [2, 128], strides = [1, 1]} : vector<2x192xf32> to vector<2x128xf32>
    %118 = vector.extract_strided_slice %116 {offsets = [0, 0], sizes = [2, 128], strides = [1, 1]} : vector<2x192xf32> to vector<2x128xf32>
    %119 = arith.addf %117, %118 : vector<2x128xf32>
    %120 = arith.negf %119 : vector<2x128xf32>
    %121 = math.exp %120 : vector<2x128xf32>
    %cst_47 = arith.constant 1.000000e+00 : f32
    %122 = vector.broadcast %cst_47 : f32 to vector<2x128xf32>
    %123 = arith.addf %122, %121 : vector<2x128xf32>
    %124 = arith.divf %122, %123 : vector<2x128xf32>
    %125 = vector.extract_strided_slice %124 {offsets = [0, 0], sizes = [2, 64], strides = [1, 1]} : vector<2x128xf32> to vector<2x64xf32>
    %126 = vector.extract_strided_slice %124 {offsets = [0, 64], sizes = [2, 64], strides = [1, 1]} : vector<2x128xf32> to vector<2x64xf32>
    %127 = vector.extract_strided_slice %114 {offsets = [0, 128], sizes = [2, 64], strides = [1, 1]} : vector<2x192xf32> to vector<2x64xf32>
    %128 = vector.extract_strided_slice %116 {offsets = [0, 128], sizes = [2, 64], strides = [1, 1]} : vector<2x192xf32> to vector<2x64xf32>
    %129 = arith.addf %128, %12 : vector<2x64xf32>
    %130 = arith.mulf %125, %129 : vector<2x64xf32>
    %131 = arith.addf %127, %130 : vector<2x64xf32>
    %132 = math.tanh %131 : vector<2x64xf32>
    %cst_48 = arith.constant 1.000000e+00 : f32
    %133 = vector.broadcast %cst_48 : f32 to vector<2x64xf32>
    %134 = arith.subf %133, %126 : vector<2x64xf32>
    %135 = arith.mulf %134, %132 : vector<2x64xf32>
    %136 = arith.mulf %126, %104 : vector<2x64xf32>
    %137 = arith.addf %135, %136 : vector<2x64xf32>
    %138 = vector.extract_strided_slice %137 {offsets = [0, 0], sizes = [2, 32], strides = [1, 1]} : vector<2x64xf32> to vector<2x32xf32>
    %c3_49 = arith.constant 3 : index
    %c0_50 = arith.constant 0 : index
    %c0_51 = arith.constant 0 : index
    %139 = vector.load %arg6[%c3_49, %c0_50, %c0_51] : memref<8x2x64xf32, #tpu.memory_space<vmem>>, vector<1x2x32xf32>
    %140 = vector.shape_cast %139 : vector<1x2x32xf32> to vector<2x32xf32>
    %141 = vector.shape_cast %138 : vector<2x32xf32> to vector<1x2x32xf32>
    tpu.vector_store %arg6[%c3_49, %c0_50, %c0_51], %141 {strides = array<i32>} : memref<8x2x64xf32, #tpu.memory_space<vmem>>, vector<1x2x32xf32>,
    %142 = vector.extract_strided_slice %137 {offsets = [0, 32], sizes = [2, 32], strides = [1, 1]} : vector<2x64xf32> to vector<2x32xf32>
    %c4 = arith.constant 4 : index
    %c0_52 = arith.constant 0 : index
    %c32_53 = arith.constant 32 : index
    %143 = vector.load %arg6[%c4, %c0_52, %c32_53] : memref<8x2x64xf32, #tpu.memory_space<vmem>>, vector<1x2x32xf32>
    %144 = vector.shape_cast %143 : vector<1x2x32xf32> to vector<2x32xf32>
    %145 = vector.shape_cast %142 : vector<2x32xf32> to vector<1x2x32xf32>
    tpu.vector_store %arg6[%c4, %c0_52, %c32_53], %145 {strides = array<i32>} : memref<8x2x64xf32, #tpu.memory_space<vmem>>, vector<1x2x32xf32>,
    %c4_54 = arith.constant 4 : index
    %c0_55 = arith.constant 0 : index
    %c0_56 = arith.constant 0 : index
    %146 = vector.load %arg7[%c4_54, %c0_55, %c0_56] : memref<8x2x192xf32, #tpu.memory_space<vmem>>, vector<1x2x192xf32>
    %147 = vector.shape_cast %146 : vector<1x2x192xf32> to vector<2x192xf32>
    %148 = arith.truncf %137 : vector<2x64xf32> to vector<2x64xbf16>
    %cst_57 = arith.constant dense<0.000000e+00> : vector<2x192xf32>
    %149 = tpu.matmul %148, %9, %cst_57 {dimension_numbers = #tpu.dot_dimension_numbers<[1], [0], [0], [1], [0, 0, 1, 1], [], []>} : vector<2x64xbf16>, vector<64x192xbf16>, vector<2x192xf32> -> vector<2x192xf32>
    %150 = vector.extract_strided_slice %147 {offsets = [0, 0], sizes = [2, 128], strides = [1, 1]} : vector<2x192xf32> to vector<2x128xf32>
    %151 = vector.extract_strided_slice %149 {offsets = [0, 0], sizes = [2, 128], strides = [1, 1]} : vector<2x192xf32> to vector<2x128xf32>
    %152 = arith.addf %150, %151 : vector<2x128xf32>
    %153 = arith.negf %152 : vector<2x128xf32>
    %154 = math.exp %153 : vector<2x128xf32>
    %cst_58 = arith.constant 1.000000e+00 : f32
    %155 = vector.broadcast %cst_58 : f32 to vector<2x128xf32>
    %156 = arith.addf %155, %154 : vector<2x128xf32>
    %157 = arith.divf %155, %156 : vector<2x128xf32>
    %158 = vector.extract_strided_slice %157 {offsets = [0, 0], sizes = [2, 64], strides = [1, 1]} : vector<2x128xf32> to vector<2x64xf32>
    %159 = vector.extract_strided_slice %157 {offsets = [0, 64], sizes = [2, 64], strides = [1, 1]} : vector<2x128xf32> to vector<2x64xf32>
    %160 = vector.extract_strided_slice %147 {offsets = [0, 128], sizes = [2, 64], strides = [1, 1]} : vector<2x192xf32> to vector<2x64xf32>
    %161 = vector.extract_strided_slice %149 {offsets = [0, 128], sizes = [2, 64], strides = [1, 1]} : vector<2x192xf32> to vector<2x64xf32>
    %162 = arith.addf %161, %12 : vector<2x64xf32>
    %163 = arith.mulf %158, %162 : vector<2x64xf32>
    %164 = arith.addf %160, %163 : vector<2x64xf32>
    %165 = math.tanh %164 : vector<2x64xf32>
    %cst_59 = arith.constant 1.000000e+00 : f32
    %166 = vector.broadcast %cst_59 : f32 to vector<2x64xf32>
    %167 = arith.subf %166, %159 : vector<2x64xf32>
    %168 = arith.mulf %167, %165 : vector<2x64xf32>
    %169 = arith.mulf %159, %137 : vector<2x64xf32>
    %170 = arith.addf %168, %169 : vector<2x64xf32>
    %171 = vector.extract_strided_slice %170 {offsets = [0, 0], sizes = [2, 32], strides = [1, 1]} : vector<2x64xf32> to vector<2x32xf32>
    %c4_60 = arith.constant 4 : index
    %c0_61 = arith.constant 0 : index
    %c0_62 = arith.constant 0 : index
    %172 = vector.load %arg6[%c4_60, %c0_61, %c0_62] : memref<8x2x64xf32, #tpu.memory_space<vmem>>, vector<1x2x32xf32>
    %173 = vector.shape_cast %172 : vector<1x2x32xf32> to vector<2x32xf32>
    %174 = vector.shape_cast %171 : vector<2x32xf32> to vector<1x2x32xf32>
    tpu.vector_store %arg6[%c4_60, %c0_61, %c0_62], %174 {strides = array<i32>} : memref<8x2x64xf32, #tpu.memory_space<vmem>>, vector<1x2x32xf32>,
    %175 = vector.extract_strided_slice %170 {offsets = [0, 32], sizes = [2, 32], strides = [1, 1]} : vector<2x64xf32> to vector<2x32xf32>
    %c3_63 = arith.constant 3 : index
    %c0_64 = arith.constant 0 : index
    %c32_65 = arith.constant 32 : index
    %176 = vector.load %arg6[%c3_63, %c0_64, %c32_65] : memref<8x2x64xf32, #tpu.memory_space<vmem>>, vector<1x2x32xf32>
    %177 = vector.shape_cast %176 : vector<1x2x32xf32> to vector<2x32xf32>
    %178 = vector.shape_cast %175 : vector<2x32xf32> to vector<1x2x32xf32>
    tpu.vector_store %arg6[%c3_63, %c0_64, %c32_65], %178 {strides = array<i32>} : memref<8x2x64xf32, #tpu.memory_space<vmem>>, vector<1x2x32xf32>,
    %c5_66 = arith.constant 5 : index
    %c0_67 = arith.constant 0 : index
    %c0_68 = arith.constant 0 : index
    %179 = vector.load %arg7[%c5_66, %c0_67, %c0_68] : memref<8x2x192xf32, #tpu.memory_space<vmem>>, vector<1x2x192xf32>
    %180 = vector.shape_cast %179 : vector<1x2x192xf32> to vector<2x192xf32>
    %181 = arith.truncf %170 : vector<2x64xf32> to vector<2x64xbf16>
    %cst_69 = arith.constant dense<0.000000e+00> : vector<2x192xf32>
    %182 = tpu.matmul %181, %9, %cst_69 {dimension_numbers = #tpu.dot_dimension_numbers<[1], [0], [0], [1], [0, 0, 1, 1], [], []>} : vector<2x64xbf16>, vector<64x192xbf16>, vector<2x192xf32> -> vector<2x192xf32>
    %183 = vector.extract_strided_slice %180 {offsets = [0, 0], sizes = [2, 128], strides = [1, 1]} : vector<2x192xf32> to vector<2x128xf32>
    %184 = vector.extract_strided_slice %182 {offsets = [0, 0], sizes = [2, 128], strides = [1, 1]} : vector<2x192xf32> to vector<2x128xf32>
    %185 = arith.addf %183, %184 : vector<2x128xf32>
    %186 = arith.negf %185 : vector<2x128xf32>
    %187 = math.exp %186 : vector<2x128xf32>
    %cst_70 = arith.constant 1.000000e+00 : f32
    %188 = vector.broadcast %cst_70 : f32 to vector<2x128xf32>
    %189 = arith.addf %188, %187 : vector<2x128xf32>
    %190 = arith.divf %188, %189 : vector<2x128xf32>
    %191 = vector.extract_strided_slice %190 {offsets = [0, 0], sizes = [2, 64], strides = [1, 1]} : vector<2x128xf32> to vector<2x64xf32>
    %192 = vector.extract_strided_slice %190 {offsets = [0, 64], sizes = [2, 64], strides = [1, 1]} : vector<2x128xf32> to vector<2x64xf32>
    %193 = vector.extract_strided_slice %180 {offsets = [0, 128], sizes = [2, 64], strides = [1, 1]} : vector<2x192xf32> to vector<2x64xf32>
    %194 = vector.extract_strided_slice %182 {offsets = [0, 128], sizes = [2, 64], strides = [1, 1]} : vector<2x192xf32> to vector<2x64xf32>
    %195 = arith.addf %194, %12 : vector<2x64xf32>
    %196 = arith.mulf %191, %195 : vector<2x64xf32>
    %197 = arith.addf %193, %196 : vector<2x64xf32>
    %198 = math.tanh %197 : vector<2x64xf32>
    %cst_71 = arith.constant 1.000000e+00 : f32
    %199 = vector.broadcast %cst_71 : f32 to vector<2x64xf32>
    %200 = arith.subf %199, %192 : vector<2x64xf32>
    %201 = arith.mulf %200, %198 : vector<2x64xf32>
    %202 = arith.mulf %192, %170 : vector<2x64xf32>
    %203 = arith.addf %201, %202 : vector<2x64xf32>
    %204 = vector.extract_strided_slice %203 {offsets = [0, 0], sizes = [2, 32], strides = [1, 1]} : vector<2x64xf32> to vector<2x32xf32>
    %c5_72 = arith.constant 5 : index
    %c0_73 = arith.constant 0 : index
    %c0_74 = arith.constant 0 : index
    %205 = vector.load %arg6[%c5_72, %c0_73, %c0_74] : memref<8x2x64xf32, #tpu.memory_space<vmem>>, vector<1x2x32xf32>
    %206 = vector.shape_cast %205 : vector<1x2x32xf32> to vector<2x32xf32>
    %207 = vector.shape_cast %204 : vector<2x32xf32> to vector<1x2x32xf32>
    tpu.vector_store %arg6[%c5_72, %c0_73, %c0_74], %207 {strides = array<i32>} : memref<8x2x64xf32, #tpu.memory_space<vmem>>, vector<1x2x32xf32>,
    %208 = vector.extract_strided_slice %203 {offsets = [0, 32], sizes = [2, 32], strides = [1, 1]} : vector<2x64xf32> to vector<2x32xf32>
    %c2_75 = arith.constant 2 : index
    %c0_76 = arith.constant 0 : index
    %c32_77 = arith.constant 32 : index
    %209 = vector.load %arg6[%c2_75, %c0_76, %c32_77] : memref<8x2x64xf32, #tpu.memory_space<vmem>>, vector<1x2x32xf32>
    %210 = vector.shape_cast %209 : vector<1x2x32xf32> to vector<2x32xf32>
    %211 = vector.shape_cast %208 : vector<2x32xf32> to vector<1x2x32xf32>
    tpu.vector_store %arg6[%c2_75, %c0_76, %c32_77], %211 {strides = array<i32>} : memref<8x2x64xf32, #tpu.memory_space<vmem>>, vector<1x2x32xf32>,
    %c6_78 = arith.constant 6 : index
    %c0_79 = arith.constant 0 : index
    %c0_80 = arith.constant 0 : index
    %212 = vector.load %arg7[%c6_78, %c0_79, %c0_80] : memref<8x2x192xf32, #tpu.memory_space<vmem>>, vector<1x2x192xf32>
    %213 = vector.shape_cast %212 : vector<1x2x192xf32> to vector<2x192xf32>
    %214 = arith.truncf %203 : vector<2x64xf32> to vector<2x64xbf16>
    %cst_81 = arith.constant dense<0.000000e+00> : vector<2x192xf32>
    %215 = tpu.matmul %214, %9, %cst_81 {dimension_numbers = #tpu.dot_dimension_numbers<[1], [0], [0], [1], [0, 0, 1, 1], [], []>} : vector<2x64xbf16>, vector<64x192xbf16>, vector<2x192xf32> -> vector<2x192xf32>
    %216 = vector.extract_strided_slice %213 {offsets = [0, 0], sizes = [2, 128], strides = [1, 1]} : vector<2x192xf32> to vector<2x128xf32>
    %217 = vector.extract_strided_slice %215 {offsets = [0, 0], sizes = [2, 128], strides = [1, 1]} : vector<2x192xf32> to vector<2x128xf32>
    %218 = arith.addf %216, %217 : vector<2x128xf32>
    %219 = arith.negf %218 : vector<2x128xf32>
    %220 = math.exp %219 : vector<2x128xf32>
    %cst_82 = arith.constant 1.000000e+00 : f32
    %221 = vector.broadcast %cst_82 : f32 to vector<2x128xf32>
    %222 = arith.addf %221, %220 : vector<2x128xf32>
    %223 = arith.divf %221, %222 : vector<2x128xf32>
    %224 = vector.extract_strided_slice %223 {offsets = [0, 0], sizes = [2, 64], strides = [1, 1]} : vector<2x128xf32> to vector<2x64xf32>
    %225 = vector.extract_strided_slice %223 {offsets = [0, 64], sizes = [2, 64], strides = [1, 1]} : vector<2x128xf32> to vector<2x64xf32>
    %226 = vector.extract_strided_slice %213 {offsets = [0, 128], sizes = [2, 64], strides = [1, 1]} : vector<2x192xf32> to vector<2x64xf32>
    %227 = vector.extract_strided_slice %215 {offsets = [0, 128], sizes = [2, 64], strides = [1, 1]} : vector<2x192xf32> to vector<2x64xf32>
    %228 = arith.addf %227, %12 : vector<2x64xf32>
    %229 = arith.mulf %224, %228 : vector<2x64xf32>
    %230 = arith.addf %226, %229 : vector<2x64xf32>
    %231 = math.tanh %230 : vector<2x64xf32>
    %cst_83 = arith.constant 1.000000e+00 : f32
    %232 = vector.broadcast %cst_83 : f32 to vector<2x64xf32>
    %233 = arith.subf %232, %225 : vector<2x64xf32>
    %234 = arith.mulf %233, %231 : vector<2x64xf32>
    %235 = arith.mulf %225, %203 : vector<2x64xf32>
    %236 = arith.addf %234, %235 : vector<2x64xf32>
    %237 = vector.extract_strided_slice %236 {offsets = [0, 0], sizes = [2, 32], strides = [1, 1]} : vector<2x64xf32> to vector<2x32xf32>
    %c6_84 = arith.constant 6 : index
    %c0_85 = arith.constant 0 : index
    %c0_86 = arith.constant 0 : index
    %238 = vector.load %arg6[%c6_84, %c0_85, %c0_86] : memref<8x2x64xf32, #tpu.memory_space<vmem>>, vector<1x2x32xf32>
    %239 = vector.shape_cast %238 : vector<1x2x32xf32> to vector<2x32xf32>
    %240 = vector.shape_cast %237 : vector<2x32xf32> to vector<1x2x32xf32>
    tpu.vector_store %arg6[%c6_84, %c0_85, %c0_86], %240 {strides = array<i32>} : memref<8x2x64xf32, #tpu.memory_space<vmem>>, vector<1x2x32xf32>,
    %241 = vector.extract_strided_slice %236 {offsets = [0, 32], sizes = [2, 32], strides = [1, 1]} : vector<2x64xf32> to vector<2x32xf32>
    %c1_87 = arith.constant 1 : index
    %c0_88 = arith.constant 0 : index
    %c32_89 = arith.constant 32 : index
    %242 = vector.load %arg6[%c1_87, %c0_88, %c32_89] : memref<8x2x64xf32, #tpu.memory_space<vmem>>, vector<1x2x32xf32>
    %243 = vector.shape_cast %242 : vector<1x2x32xf32> to vector<2x32xf32>
    %244 = vector.shape_cast %241 : vector<2x32xf32> to vector<1x2x32xf32>
    tpu.vector_store %arg6[%c1_87, %c0_88, %c32_89], %244 {strides = array<i32>} : memref<8x2x64xf32, #tpu.memory_space<vmem>>, vector<1x2x32xf32>,
    %c7_90 = arith.constant 7 : index
    %c0_91 = arith.constant 0 : index
    %c0_92 = arith.constant 0 : index
    %245 = vector.load %arg7[%c7_90, %c0_91, %c0_92] : memref<8x2x192xf32, #tpu.memory_space<vmem>>, vector<1x2x192xf32>
    %246 = vector.shape_cast %245 : vector<1x2x192xf32> to vector<2x192xf32>
    %247 = arith.truncf %236 : vector<2x64xf32> to vector<2x64xbf16>
    %cst_93 = arith.constant dense<0.000000e+00> : vector<2x192xf32>
    %248 = tpu.matmul %247, %9, %cst_93 {dimension_numbers = #tpu.dot_dimension_numbers<[1], [0], [0], [1], [0, 0, 1, 1], [], []>} : vector<2x64xbf16>, vector<64x192xbf16>, vector<2x192xf32> -> vector<2x192xf32>
    %249 = vector.extract_strided_slice %246 {offsets = [0, 0], sizes = [2, 128], strides = [1, 1]} : vector<2x192xf32> to vector<2x128xf32>
    %250 = vector.extract_strided_slice %248 {offsets = [0, 0], sizes = [2, 128], strides = [1, 1]} : vector<2x192xf32> to vector<2x128xf32>
    %251 = arith.addf %249, %250 : vector<2x128xf32>
    %252 = arith.negf %251 : vector<2x128xf32>
    %253 = math.exp %252 : vector<2x128xf32>
    %cst_94 = arith.constant 1.000000e+00 : f32
    %254 = vector.broadcast %cst_94 : f32 to vector<2x128xf32>
    %255 = arith.addf %254, %253 : vector<2x128xf32>
    %256 = arith.divf %254, %255 : vector<2x128xf32>
    %257 = vector.extract_strided_slice %256 {offsets = [0, 0], sizes = [2, 64], strides = [1, 1]} : vector<2x128xf32> to vector<2x64xf32>
    %258 = vector.extract_strided_slice %256 {offsets = [0, 64], sizes = [2, 64], strides = [1, 1]} : vector<2x128xf32> to vector<2x64xf32>
    %259 = vector.extract_strided_slice %246 {offsets = [0, 128], sizes = [2, 64], strides = [1, 1]} : vector<2x192xf32> to vector<2x64xf32>
    %260 = vector.extract_strided_slice %248 {offsets = [0, 128], sizes = [2, 64], strides = [1, 1]} : vector<2x192xf32> to vector<2x64xf32>
    %261 = arith.addf %260, %12 : vector<2x64xf32>
    %262 = arith.mulf %257, %261 : vector<2x64xf32>
    %263 = arith.addf %259, %262 : vector<2x64xf32>
    %264 = math.tanh %263 : vector<2x64xf32>
    %cst_95 = arith.constant 1.000000e+00 : f32
    %265 = vector.broadcast %cst_95 : f32 to vector<2x64xf32>
    %266 = arith.subf %265, %258 : vector<2x64xf32>
    %267 = arith.mulf %266, %264 : vector<2x64xf32>
    %268 = arith.mulf %258, %236 : vector<2x64xf32>
    %269 = arith.addf %267, %268 : vector<2x64xf32>
    %270 = vector.extract_strided_slice %269 {offsets = [0, 0], sizes = [2, 32], strides = [1, 1]} : vector<2x64xf32> to vector<2x32xf32>
    %c7_96 = arith.constant 7 : index
    %c0_97 = arith.constant 0 : index
    %c0_98 = arith.constant 0 : index
    %271 = vector.load %arg6[%c7_96, %c0_97, %c0_98] : memref<8x2x64xf32, #tpu.memory_space<vmem>>, vector<1x2x32xf32>
    %272 = vector.shape_cast %271 : vector<1x2x32xf32> to vector<2x32xf32>
    %273 = vector.shape_cast %270 : vector<2x32xf32> to vector<1x2x32xf32>
    tpu.vector_store %arg6[%c7_96, %c0_97, %c0_98], %273 {strides = array<i32>} : memref<8x2x64xf32, #tpu.memory_space<vmem>>, vector<1x2x32xf32>,
    %274 = vector.extract_strided_slice %269 {offsets = [0, 32], sizes = [2, 32], strides = [1, 1]} : vector<2x64xf32> to vector<2x32xf32>
    %c0_99 = arith.constant 0 : index
    %c0_100 = arith.constant 0 : index
    %c32_101 = arith.constant 32 : index
    %275 = vector.load %arg6[%c0_99, %c0_100, %c32_101] : memref<8x2x64xf32, #tpu.memory_space<vmem>>, vector<1x2x32xf32>
    %276 = vector.shape_cast %275 : vector<1x2x32xf32> to vector<2x32xf32>
    %277 = vector.shape_cast %274 : vector<2x32xf32> to vector<1x2x32xf32>
    tpu.vector_store %arg6[%c0_99, %c0_100, %c32_101], %277 {strides = array<i32>} : memref<8x2x64xf32, #tpu.memory_space<vmem>>, vector<1x2x32xf32>,
    return
  }
  func.func @transform_0(%arg0: i32) -> (i32, i32, i32) {
    %c0_i32 = arith.constant 0 : i32
    %c0_i32_0 = arith.constant 0 : i32
    %c0_i32_1 = arith.constant 0 : i32
    return %c0_i32, %arg0, %c0_i32_0 : i32, i32, i32
  }
  func.func @transform_1(%arg0: i32) -> (i32, i32) {
    %c0_i32 = arith.constant 0 : i32
    %c0_i32_0 = arith.constant 0 : i32
    %c0_i32_1 = arith.constant 0 : i32
    return %c0_i32, %c0_i32_0 : i32, i32
  }
  func.func @transform_2(%arg0: i32) -> (i32, i32) {
    %c0_i32 = arith.constant 0 : i32
    %c0_i32_0 = arith.constant 0 : i32
    %c0_i32_1 = arith.constant 0 : i32
    return %c0_i32, %c0_i32_0 : i32, i32
  }
  func.func @transform_3(%arg0: i32) -> (i32, i32) {
    %c0_i32 = arith.constant 0 : i32
    %c0_i32_0 = arith.constant 0 : i32
    %c0_i32_1 = arith.constant 0 : i32
    return %c0_i32, %c0_i32_0 : i32, i32
  }
  func.func @transform_4(%arg0: i32) -> (i32, i32) {
    %c0_i32 = arith.constant 0 : i32
    %c0_i32_0 = arith.constant 0 : i32
    %c0_i32_1 = arith.constant 0 : i32
    return %c0_i32, %c0_i32_0 : i32, i32
  }
  func.func @transform_5(%arg0: i32) -> (i32, i32, i32) {
    %c0_i32 = arith.constant 0 : i32
    %c0_i32_0 = arith.constant 0 : i32
    %c0_i32_1 = arith.constant 0 : i32
    return %c0_i32, %arg0, %c0_i32_0 : i32, i32, i32
  }
}

</mosaic_0001>

<llo_original>
// kernel: tpu_custom_call.1
$region0: #{tpu_custom_call.1}
  #allocation0 [shape = 'u32[]', space=smem, size = 0x4, offset = 0x4, fixed_abs, tag = 'smem constant byte address 0x4 - core index']
  #allocation1 [shape = 'u32[72,128]{1,0:T(1,128)}', space=vmem, size = 0x9000, scoped, tag = 'internal scratch']
  #allocation2 [shape = 'f32[8,2,192]{2,1,0:T(2,128)}', space=vmem, size = 0x4000, scoped, tag = 'scratch operand']
  %s0 = inlined_call_operand.hbm [shape: bf16[8,2,46], index: 0, kind: input, shape index: {}]
  %s1 = inlined_call_operand.hbm [shape: bf16[46,192], index: 1, kind: input, shape index: {}]
  %s2 = inlined_call_operand.hbm [shape: f32[1,192], index: 2, kind: input, shape index: {}]
  %s3 = inlined_call_operand.hbm [shape: bf16[64,192], index: 3, kind: input, shape index: {}]
  %s4 = inlined_call_operand.vmem [shape: f32[1,64], index: 4, kind: input, shape index: {}]
  %s5 = inlined_call_operand.hbm [shape: f32[8,2,64], index: 5, kind: output, shape index: {}]
  %s6 = sld [smem:[#allocation0]]
  $region46: #{tpu_custom_call.1} parent=0
    _
  %s8 = ssub.s32 1, %s6
  %s9 = scalar_select 0, %s8, %s6
  $region1: #{tpu_custom_call.1} parent=0
    #allocation3 [shape = 'u8[4096]{0}', space=vmem, size = 0x1000, scoped, tag = 'input window, operand 0, single buffered']
    #allocation4 [shape = 's32[1]{0}', space=sflag, size = 0x4, scoped, tag = 'scoped memory for tpu_custom_call.1']
    #allocation5 [shape = 's32[1]{0}', space=sflag, size = 0x4, scoped, tag = 'scoped memory for tpu_custom_call.1']
    #allocation6 [shape = 'u8[24576]{0}', space=vmem, size = 0x6000, scoped, tag = 'input window, operand 1, single buffered']
    #allocation7 [shape = 's32[1]{0}', space=sflag, size = 0x4, scoped, tag = 'scoped memory for tpu_custom_call.1']
    #allocation8 [shape = 'u8[1024]{0}', space=vmem, size = 0x400, scoped, tag = 'input window, operand 2, single buffered']
    #allocation9 [shape = 'u8[32768]{0}', space=vmem, size = 0x8000, scoped, tag = 'input window, operand 3, single buffered']
    #allocation10 [shape = 's32[1]{0}', space=sflag, size = 0x4, scoped, tag = 'scoped memory for tpu_custom_call.1']
    #allocation11 [shape = 'u8[8192]{0}', space=vmem, size = 0x2000, scoped, tag = 'output window, operand 0, single buffered']
    %10 = vsyncpa [#allocation4], 0
    %11 = vsyncpa [#allocation7], 0
    %12 = vsyncpa [#allocation10], 0
    %13 = vsyncpa [#allocation5], 0
    // Predicated region
    $region2: #{tpu_custom_call.1} parent=1 // pred_check
      _
    $region3: #{tpu_custom_call.1} parent=1 // pred_check_branch
      %15 = sbr.rel (0) target = $region5
    $region4: #{tpu_custom_call.1} parent=1 // pred_region
      %17 = vsyncadd [#allocation4], 0
      %s18 = sshll.u32 %s0, 4
      %s19 = int_to_ptr.hbm [resolvable:$true] %s18
      %s20 = sshll.u32 [#allocation3], 4
      %s21 = int_to_ptr.vmem [resolvable:$true] %s20
      %26 = dma.hbm_to_vmem [thread:$0]  %s19, 128, %s21, [#allocation4], 16, 16, 1
    $region5: #{tpu_custom_call.1} parent=1 // pred_fallthru
      _
    // Predicated region
    $region6: #{tpu_custom_call.1} parent=1 // pred_check
      _
    $region7: #{tpu_custom_call.1} parent=1 // pred_check_branch
      %28 = sbr.rel (0) target = $region9
    $region8: #{tpu_custom_call.1} parent=1 // pred_region
      %30 = vsyncadd [#allocation7], 0
      %s31 = sshll.u32 %s1, 4
      %s32 = int_to_ptr.hbm [resolvable:$true] %s31
      %s33 = sshll.u32 [#allocation6], 4
      %s34 = int_to_ptr.vmem [resolvable:$true] %s33
      %39 = dma.hbm_to_vmem [thread:$0]  %s32, 768, %s34, [#allocation7], 128, 128, 8
    $region9: #{tpu_custom_call.1} parent=1 // pred_fallthru
      _
    // Predicated region
    $region10: #{tpu_custom_call.1} parent=1 // pred_check
      _
    $region11: #{tpu_custom_call.1} parent=1 // pred_check_branch
      %41 = sbr.rel (0) target = $region13
    $region12: #{tpu_custom_call.1} parent=1 // pred_region
      %43 = vsyncadd [#allocation7], 0
      %s45 = sshll.u32 %s2, 4
      %s46 = int_to_ptr.hbm [resolvable:$true] %s45
      %s47 = sshll.u32 [#allocation8], 4
      %s48 = int_to_ptr.vmem [resolvable:$true] %s47
      %50 = dma.hbm_to_vmem [thread:$0]  %s46, 32, %s48, [#allocation7]
    $region13: #{tpu_custom_call.1} parent=1 // pred_fallthru
      _
    // Predicated region
    $region14: #{tpu_custom_call.1} parent=1 // pred_check
      _
    $region15: #{tpu_custom_call.1} parent=1 // pred_check_branch
      %52 = sbr.rel (0) target = $region17
    $region16: #{tpu_custom_call.1} parent=1 // pred_region
      %54 = vsyncadd [#allocation10], 0
      %s55 = sshll.u32 %s3, 4
      %s56 = int_to_ptr.hbm [resolvable:$true] %s55
      %s57 = sshll.u32 [#allocation9], 4
      %s58 = int_to_ptr.vmem [resolvable:$true] %s57
      %63 = dma.hbm_to_vmem [thread:$0]  %s56, 1024, %s58, [#allocation10], 128, 128, 8
    $region17: #{tpu_custom_call.1} parent=1 // pred_fallthru
      _
    // Predicated region
    $region18: #{tpu_custom_call.1} parent=1 // pred_check
      _
    $region19: #{tpu_custom_call.1} parent=1 // pred_check_branch
      %65 = sbr.rel (0) target = $region21
    $region20: #{tpu_custom_call.1} parent=1 // pred_region
      _
    $region21: #{tpu_custom_call.1} parent=1 // pred_fallthru
      _
    // Predicated region
    $region22: #{tpu_custom_call.1} parent=1 // pred_check
      _
    $region23: #{tpu_custom_call.1} parent=1 // pred_check_branch
      %67 = sbr.rel (0) target = $region25
    $region24: #{tpu_custom_call.1} parent=1 // pred_region
      %69 = dma.done [#allocation4], 128
    $region25: #{tpu_custom_call.1} parent=1 // pred_fallthru
      _
    // Predicated region
    $region26: #{tpu_custom_call.1} parent=1 // pred_check
      _
    $region27: #{tpu_custom_call.1} parent=1 // pred_check_branch
      %71 = sbr.rel (0) target = $region29
    $region28: #{tpu_custom_call.1} parent=1 // pred_region
      %73 = dma.done [#allocation7], 768
    $region29: #{tpu_custom_call.1} parent=1 // pred_fallthru
      _
    // Predicated region
    $region30: #{tpu_custom_call.1} parent=1 // pred_check
      _
    $region31: #{tpu_custom_call.1} parent=1 // pred_check_branch
      %75 = sbr.rel (0) target = $region33
    $region32: #{tpu_custom_call.1} parent=1 // pred_region
      %77 = dma.done [#allocation7], 32
    $region33: #{tpu_custom_call.1} parent=1 // pred_fallthru
      _
    // Predicated region
    $region34: #{tpu_custom_call.1} parent=1 // pred_check
      _
    $region35: #{tpu_custom_call.1} parent=1 // pred_check_branch
      %79 = sbr.rel (0) target = $region37
    $region36: #{tpu_custom_call.1} parent=1 // pred_region
      %81 = dma.done [#allocation10], 1024
    $region37: #{tpu_custom_call.1} parent=1 // pred_fallthru
      _
    %v83 = vld [vmem:[#allocation3] sm:$0x1]
    %v84 = vld [vmem:[#allocation3 + $0x1] sm:$0x1]
    %v85 = vld [vmem:[#allocation3 + $0x2] sm:$0x1]
    %v86 = vld [vmem:[#allocation3 + $0x3] sm:$0x1]
    %v87 = vld [vmem:[#allocation3 + $0x4] sm:$0x1]
    %v88 = vld [vmem:[#allocation3 + $0x5] sm:$0x1]
    %v89 = vld [vmem:[#allocation3 + $0x6] sm:$0x1]
    %v90 = vld [vmem:[#allocation3 + $0x7] sm:$0x1]
    %v91 = vld [vmem:[#allocation6] sm:$0xff]
    %v92 = vld [vmem:[#allocation6 + $0x8] sm:$0xff]
    %v93 = vld [vmem:[#allocation6 + $0x10] sm:$0xff]
    %v94 = vld [vmem:[#allocation6 + $0x18] sm:$0xff]
    %v95 = vld [vmem:[#allocation6 + $0x20] sm:$0xff]
    %v96 = vld [vmem:[#allocation6 + $0x28] sm:$0x77]
    %v97 = vld [vmem:[#allocation8] sm:$0x3]
    %v99 = vperm.slane %v97, 0
    %v100 = vperm.slane %v97, 1
    %104 = vst [vmem:[#allocation1] ss:$9 sm:$0xff] %v83
    %s106 = scalar_lea.vmem [#allocation1], 1
    %107 = vst [vmem:[%s106] ss:$9 sm:$0xff] %v84
    %s109 = scalar_lea.vmem [#allocation1], 2
    %110 = vst [vmem:[%s109] ss:$9 sm:$0xff] %v85
    %s112 = scalar_lea.vmem [#allocation1], 3
    %113 = vst [vmem:[%s112] ss:$9 sm:$0xff] %v86
    %s115 = scalar_lea.vmem [#allocation1], 4
    %116 = vst [vmem:[%s115] ss:$9 sm:$0xff] %v87
    %s118 = scalar_lea.vmem [#allocation1], 5
    %119 = vst [vmem:[%s118] ss:$9 sm:$0xff] %v88
    %s121 = scalar_lea.vmem [#allocation1], 6
    %122 = vst [vmem:[%s121] ss:$9 sm:$0xff] %v89
    %s124 = scalar_lea.vmem [#allocation1], 7
    %125 = vst [vmem:[%s124] ss:$9 sm:$0xff] %v90
    %v126 = vld [vmem:[#allocation1] sm:$0xff]
    %v133 = vunpack.c.l.b16 %v91
    %v134 = vunpack.c.h.b16 %v91
    %v135 = vunpack.c.l.b16 %v92
    %v136 = vunpack.c.h.b16 %v92
    %v137 = vunpack.c.l.b16 %v93
    %v138 = vunpack.c.h.b16 %v93
    %v139 = vunpack.c.l.b16 %v94
    %v140 = vunpack.c.h.b16 %v94
    %v141 = vunpack.c.l.b16 %v95
    %v142 = vunpack.c.h.b16 %v95
    %v143 = vunpack.c.l.b16 %v96
    %v144 = vunpack.c.h.b16 %v96
    %v145 = vpack.c.b16 %v135, %v133
    %v146 = vpack.c.b16 %v136, %v134
    %v147 = vpack.c.b16 %v139, %v137
    %v148 = vpack.c.b16 %v140, %v138
    %v149 = vpack.c.b16 %v143, %v141
    %v150 = vpack.c.b16 %v144, %v142
    %vm155 = vcmask 375808
    %v156 = vsel %vm155, %v126, 0
    %vm158 = vcmask 1046528
    %v160 = vsel %vm158, %v149, 0
    %v163 = vsel %vm158, %v150, 0
    %165 = vmatpush.bf16.msra.mxu0 0
    %166 = vmatpush.bf16.msra.mxu0 0
    %167 = vmatpush.bf16.msra.mxu0 0
    %168 = vmatpush.bf16.msra.mxu0 0
    %169 = vmatpush.bf16.msra.mxu0 0
    %170 = vmatpush.bf16.msra.mxu0 %v160
    %171 = vmatpush.bf16.msra.mxu0 %v147
    %172 = vmatpush.bf16.msra.mxu0 %v145
    %173 = vmatmul.bf16.gmra.mxu0 %v156
    %v174 = vpop.f32.mrf.mxu0
    %v175 = vadd.f32 %v99, %v174
    %v176 = vpop.f32.mrf.mxu0
    %v177 = vadd.f32 %v99, %v176
    %178 = vdwg.mxu0
    %179 = vmatpush.bf16.msra.mxu0 0
    %180 = vmatpush.bf16.msra.mxu0 0
    %181 = vmatpush.bf16.msra.mxu0 0
    %182 = vmatpush.bf16.msra.mxu0 0
    %183 = vmatpush.bf16.msra.mxu0 0
    %184 = vmatpush.bf16.msra.mxu0 %v163
    %185 = vmatpush.bf16.msra.mxu0 %v148
    %186 = vmatpush.bf16.msra.mxu0 %v146
    %187 = vmatmul.bf16.gmra.mxu0 %v156
    %v188 = vpop.f32.mrf.mxu0
    %v189 = vadd.f32 %v100, %v188
    %v190 = vpop.f32.mrf.mxu0
    %v191 = vadd.f32 %v100, %v190
    %192 = vdwg.mxu0
    %v197 = vrot.slane %v189, 6
    %v198 = vrot.slane %v191, 6
    %vm199 = vcmask 1041408
    %v200 = vsel %vm199, %v175, %v197
    %vm201 = vcmask 1043458
    %v202 = vsel %vm201, %v175, %v197
    %v203 = vrot.slane %v202, 2
    %vm204 = vcmask 1045508
    %v205 = vsel %vm204, %v175, %v197
    %v206 = vrot.slane %v205, 4
    %vm207 = vcmask 1045504
    %v208 = vsel %vm207, %v197, %v175
    %v209 = vrot.slane %v208, 6
    %v210 = vsel %vm199, %v177, %v198
    %v211 = vsel %vm201, %v177, %v198
    %v212 = vrot.slane %v211, 2
    %v213 = vsel %vm204, %v177, %v198
    %v214 = vrot.slane %v213, 4
    %v215 = vsel %vm207, %v198, %v177
    %v216 = vrot.slane %v215, 6
    %vm225 = vcmask 519170
    %vm226 = vmor %vm225, %vm199
    %227 = vst.msk [vmem:[#allocation2] sm:$0xf] %vm226, %v200
    %228 = vst.msk [vmem:[#allocation2 + $0x4] sm:$0xf] %vm226, %v203
    %229 = vst.msk [vmem:[#allocation2 + $0x8] sm:$0xf] %vm226, %v206
    %230 = vst.msk [vmem:[#allocation2 + $0xc] sm:$0xf] %vm226, %v209
    %231 = vst.msk [vmem:[#allocation2 + $0x10] sm:$0xf] %vm226, %v210
    %232 = vst.msk [vmem:[#allocation2 + $0x14] sm:$0xf] %vm226, %v212
    %233 = vst.msk [vmem:[#allocation2 + $0x18] sm:$0xf] %vm226, %v214
    %234 = vst.msk [vmem:[#allocation2 + $0x1c] sm:$0xf] %vm226, %v216
    %v235 = vld [vmem:[#allocation9] sm:$0xff]
    %v236 = vld [vmem:[#allocation9 + $0x8] sm:$0xff]
    %v237 = vld [vmem:[#allocation9 + $0x10] sm:$0xff]
    %v238 = vld [vmem:[#allocation9 + $0x18] sm:$0xff]
    %v239 = vld [vmem:[#allocation9 + $0x20] sm:$0xff]
    %v240 = vld [vmem:[#allocation9 + $0x28] sm:$0xff]
    %v241 = vld [vmem:[#allocation9 + $0x30] sm:$0xff]
    %v242 = vld [vmem:[#allocation9 + $0x38] sm:$0xff]
    %v243 = vld [vmem:[%s4] sm:$0x1]
    %v245 = vperm.slane %v243, 0
    %v247 = vld [vmem:[#allocation2] sm:$0xf]
    %v256 = vunpack.c.l.b16 %v235
    %v257 = vunpack.c.h.b16 %v235
    %v258 = vunpack.c.l.b16 %v236
    %v259 = vunpack.c.h.b16 %v236
    %v260 = vunpack.c.l.b16 %v237
    %v261 = vunpack.c.h.b16 %v237
    %v262 = vunpack.c.l.b16 %v238
    %v263 = vunpack.c.h.b16 %v238
    %v264 = vunpack.c.l.b16 %v239
    %v265 = vunpack.c.h.b16 %v239
    %v266 = vunpack.c.l.b16 %v240
    %v267 = vunpack.c.h.b16 %v240
    %v268 = vunpack.c.l.b16 %v241
    %v269 = vunpack.c.h.b16 %v241
    %v270 = vunpack.c.l.b16 %v242
    %v271 = vunpack.c.h.b16 %v242
    %v272 = vpack.c.b16 %v258, %v256
    %v273 = vpack.c.b16 %v259, %v257
    %v274 = vpack.c.b16 %v262, %v260
    %v275 = vpack.c.b16 %v263, %v261
    %v276 = vpack.c.b16 %v266, %v264
    %v277 = vpack.c.b16 %v267, %v265
    %v278 = vpack.c.b16 %v270, %v268
    %v279 = vpack.c.b16 %v271, %v269
    %vm288 = vcmask 523264
    %v290 = vsel %vm288, 0, 0
    %292 = vmatpush.bf16.msra.mxu0 0
    %293 = vmatpush.bf16.msra.mxu0 0
    %294 = vmatpush.bf16.msra.mxu0 0
    %295 = vmatpush.bf16.msra.mxu0 0
    %296 = vmatpush.bf16.msra.mxu0 %v278
    %297 = vmatpush.bf16.msra.mxu0 %v276
    %298 = vmatpush.bf16.msra.mxu0 %v274
    %299 = vmatpush.bf16.msra.mxu0 %v272
    %300 = vmatmul.bf16.gmra.mxu0 %v290
    %v301 = vpop.f32.mrf.mxu0
    %v302 = vadd.f32 0.0, %v301
    %v303 = vpop.f32.mrf.mxu0
    %304 = vdwg.mxu0
    %305 = vmatpush.bf16.msra.mxu0 0
    %306 = vmatpush.bf16.msra.mxu0 0
    %307 = vmatpush.bf16.msra.mxu0 0
    %308 = vmatpush.bf16.msra.mxu0 0
    %309 = vmatpush.bf16.msra.mxu0 %v279
    %310 = vmatpush.bf16.msra.mxu0 %v277
    %311 = vmatpush.bf16.msra.mxu0 %v275
    %312 = vmatpush.bf16.msra.mxu0 %v273
    %313 = vmatmul.bf16.gmra.mxu0 %v290
    %v314 = vpop.f32.mrf.mxu0
    %v315 = vadd.f32 0.0, %v314
    %v316 = vpop.f32.mrf.mxu0
    %317 = vdwg.mxu0
    %v318 = vadd.f32 %v247, %v302
    %v319 = vxor.u32 %v318, 2147483648
    %v320 = vmul.f32 %v319, 1.442695
    %v321 = vpow.pop %v320
    %v322 = vadd.f32 %v321, 1.0
    %v323 = vrcp.pop %v322
    %v324 = vmul.f32 %v322, %v323
    %v325 = vsub.f32 1.0, %v324
    %v326 = vmul.f32 %v323, %v325
    %v327 = vadd.f32 %v323, %v326
    %vm328 = vweird.f32 %v322
    %vm329 = vweird.f32 %v323
    %vm330 = vmor %vm328, %vm329
    %v331 = vsel %vm330, %v323, %v327
    %v332 = vand.u32 2147483647, %v322
    %vm333 = vcmp.eq.f32.partialorder %v332, 8.507059e+37
    %v334 = vand.u32 %v322, 2147483648
    %v335 = vor.u32 1.1754944e-38, %v334
    %v336 = vsel %vm333, %v335, %v331
    %v337 = vmul.f32 1.0, %v336
    %v338 = vadd.f32 %v315, %v245
    %v339 = vmul.f32 %v337, %v338
    %v341 = vrot.slane %v247, 2
    %v343 = vadd.f32 %v341, %v339
    %v344 = vtanh.pop %v343
    %v345 = vsub.f32 1.0, %v337
    %347 = vrot.lane.b32.xlu0 %v344, 64
    %v348 = vpop.permute.xlu0 %347
    %v350 = vmul.f32 %v345, %v348
    %v351 = vmul.f32 %v337, 0.0
    %v352 = vadd.f32 %v350, %v351
    %354 = vst [vmem:[#allocation1] ss:$4 sm:$0xff] %v352
    %v355 = vld.sshfl [vmem:[#allocation1] sm:$0xff pattern:$0x73625140]
    %356 = vrot.lane.b32.xlu0 %v355, 64
    %v357 = vpop.permute.xlu0 %356
    %vm359 = vcmask 254976
    %360 = vst.msk [vmem:[#allocation11] sm:$0x3] %vm359, %v357
    %361 = vst [vmem:[#allocation1] ss:$4 sm:$0xff] %v352
    %v362 = vld.sshfl [vmem:[#allocation1] sm:$0xff pattern:$0x73625140]
    %363 = vrot.lane.b32.xlu0 %v362, 64
    %v364 = vpop.permute.xlu0 %363
    %s366 = scalar_lea.vmem [#allocation11], 14
    %vm367 = vcmask 517376
    %368 = vst.msk [vmem:[%s366] sm:$0x3] %vm367, %v364
    %s369 = scalar_lea.vmem [#allocation2], 4
    %v370 = vld [vmem:[%s369] sm:$0xf]
    %v371 = vpack.c.bf16 %v352, %v352
    %373 = vrot.lane.b32.xlu0 %v371, 64
    %v374 = vpop.permute.xlu0 %373
    %v376 = vsel %vm288, %v374, 0
    %378 = vmatpush.bf16.msra.mxu0 0
    %379 = vmatpush.bf16.msra.mxu0 0
    %380 = vmatpush.bf16.msra.mxu0 0
    %381 = vmatpush.bf16.msra.mxu0 0
    %382 = vmatpush.bf16.msra.mxu0 %v278
    %383 = vmatpush.bf16.msra.mxu0 %v276
    %384 = vmatpush.bf16.msra.mxu0 %v274
    %385 = vmatpush.bf16.msra.mxu0 %v272
    %386 = vmatmul.bf16.gmra.mxu0 %v376
    %v387 = vpop.f32.mrf.mxu0
    %v388 = vadd.f32 0.0, %v387
    %v389 = vpop.f32.mrf.mxu0
    %390 = vdwg.mxu0
    %391 = vmatpush.bf16.msra.mxu0 0
    %392 = vmatpush.bf16.msra.mxu0 0
    %393 = vmatpush.bf16.msra.mxu0 0
    %394 = vmatpush.bf16.msra.mxu0 0
    %395 = vmatpush.bf16.msra.mxu0 %v279
    %396 = vmatpush.bf16.msra.mxu0 %v277
    %397 = vmatpush.bf16.msra.mxu0 %v275
    %398 = vmatpush.bf16.msra.mxu0 %v273
    %399 = vmatmul.bf16.gmra.mxu0 %v376
    %v400 = vpop.f32.mrf.mxu0
    %v401 = vadd.f32 0.0, %v400
    %v402 = vpop.f32.mrf.mxu0
    %403 = vdwg.mxu0
    %v404 = vadd.f32 %v370, %v388
    %v405 = vxor.u32 %v404, 2147483648
    %v406 = vmul.f32 %v405, 1.442695
    %v407 = vpow.pop %v406
    %v408 = vadd.f32 %v407, 1.0
    %v409 = vrcp.pop %v408
    %v410 = vmul.f32 %v408, %v409
    %v411 = vsub.f32 1.0, %v410
    %v412 = vmul.f32 %v409, %v411
    %v413 = vadd.f32 %v409, %v412
    %vm414 = vweird.f32 %v408
    %vm415 = vweird.f32 %v409
    %vm416 = vmor %vm414, %vm415
    %v417 = vsel %vm416, %v409, %v413
    %v418 = vand.u32 2147483647, %v408
    %vm419 = vcmp.eq.f32.partialorder %v418, 8.507059e+37
    %v420 = vand.u32 %v408, 2147483648
    %v421 = vor.u32 1.1754944e-38, %v420
    %v422 = vsel %vm419, %v421, %v417
    %v423 = vmul.f32 1.0, %v422
    %v424 = vadd.f32 %v401, %v245
    %v425 = vmul.f32 %v423, %v424
    %v427 = vrot.slane %v370, 2
    %v429 = vadd.f32 %v427, %v425
    %v430 = vtanh.pop %v429
    %v431 = vsub.f32 1.0, %v423
    %433 = vrot.lane.b32.xlu0 %v430, 64
    %v434 = vpop.permute.xlu0 %433
    %v436 = vmul.f32 %v431, %v434
    %v437 = vmul.f32 %v423, %v352
    %v438 = vadd.f32 %v436, %v437
    %440 = vst [vmem:[#allocation1] ss:$4 sm:$0xff] %v438
    %v441 = vld.sshfl [vmem:[#allocation1] sm:$0xff pattern:$0x73625140]
    %442 = vrot.lane.b32.xlu0 %v441, 64
    %v443 = vpop.permute.xlu0 %442
    %s445 = scalar_lea.vmem [#allocation11], 2
    %446 = vst.msk [vmem:[%s445] sm:$0x3] %vm359, %v443
    %447 = vst [vmem:[#allocation1] ss:$4 sm:$0xff] %v438
    %v448 = vld.sshfl [vmem:[#allocation1] sm:$0xff pattern:$0x73625140]
    %449 = vrot.lane.b32.xlu0 %v448, 64
    %v450 = vpop.permute.xlu0 %449
    %s452 = scalar_lea.vmem [#allocation11], 12
    %453 = vst.msk [vmem:[%s452] sm:$0x3] %vm367, %v450
    %s454 = scalar_lea.vmem [#allocation2], 8
    %v455 = vld [vmem:[%s454] sm:$0xf]
    %v456 = vpack.c.bf16 %v438, %v438
    %458 = vrot.lane.b32.xlu0 %v456, 64
    %v459 = vpop.permute.xlu0 %458
    %v461 = vsel %vm288, %v459, 0
    %463 = vmatpush.bf16.msra.mxu0 0
    %464 = vmatpush.bf16.msra.mxu0 0
    %465 = vmatpush.bf16.msra.mxu0 0
    %466 = vmatpush.bf16.msra.mxu0 0
    %467 = vmatpush.bf16.msra.mxu0 %v278
    %468 = vmatpush.bf16.msra.mxu0 %v276
    %469 = vmatpush.bf16.msra.mxu0 %v274
    %470 = vmatpush.bf16.msra.mxu0 %v272
    %471 = vmatmul.bf16.gmra.mxu0 %v461
    %v472 = vpop.f32.mrf.mxu0
    %v473 = vadd.f32 0.0, %v472
    %v474 = vpop.f32.mrf.mxu0
    %475 = vdwg.mxu0
    %476 = vmatpush.bf16.msra.mxu0 0
    %477 = vmatpush.bf16.msra.mxu0 0
    %478 = vmatpush.bf16.msra.mxu0 0
    %479 = vmatpush.bf16.msra.mxu0 0
    %480 = vmatpush.bf16.msra.mxu0 %v279
    %481 = vmatpush.bf16.msra.mxu0 %v277
    %482 = vmatpush.bf16.msra.mxu0 %v275
    %483 = vmatpush.bf16.msra.mxu0 %v273
    %484 = vmatmul.bf16.gmra.mxu0 %v461
    %v485 = vpop.f32.mrf.mxu0
    %v486 = vadd.f32 0.0, %v485
    %v487 = vpop.f32.mrf.mxu0
    %488 = vdwg.mxu0
    %v489 = vadd.f32 %v455, %v473
    %v490 = vxor.u32 %v489, 2147483648
    %v491 = vmul.f32 %v490, 1.442695
    %v492 = vpow.pop %v491
    %v493 = vadd.f32 %v492, 1.0
    %v494 = vrcp.pop %v493
    %v495 = vmul.f32 %v493, %v494
    %v496 = vsub.f32 1.0, %v495
    %v497 = vmul.f32 %v494, %v496
    %v498 = vadd.f32 %v494, %v497
    %vm499 = vweird.f32 %v493
    %vm500 = vweird.f32 %v494
    %vm501 = vmor %vm499, %vm500
    %v502 = vsel %vm501, %v494, %v498
    %v503 = vand.u32 2147483647, %v493
    %vm504 = vcmp.eq.f32.partialorder %v503, 8.507059e+37
    %v505 = vand.u32 %v493, 2147483648
    %v506 = vor.u32 1.1754944e-38, %v505
    %v507 = vsel %vm504, %v506, %v502
    %v508 = vmul.f32 1.0, %v507
    %v509 = vadd.f32 %v486, %v245
    %v510 = vmul.f32 %v508, %v509
    %v512 = vrot.slane %v455, 2
    %v514 = vadd.f32 %v512, %v510
    %v515 = vtanh.pop %v514
    %v516 = vsub.f32 1.0, %v508
    %518 = vrot.lane.b32.xlu0 %v515, 64
    %v519 = vpop.permute.xlu0 %518
    %v521 = vmul.f32 %v516, %v519
    %v522 = vmul.f32 %v508, %v438
    %v523 = vadd.f32 %v521, %v522
    %525 = vst [vmem:[#allocation1] ss:$4 sm:$0xff] %v523
    %v526 = vld.sshfl [vmem:[#allocation1] sm:$0xff pattern:$0x73625140]
    %527 = vrot.lane.b32.xlu0 %v526, 64
    %v528 = vpop.permute.xlu0 %527
    %s530 = scalar_lea.vmem [#allocation11], 4
    %531 = vst.msk [vmem:[%s530] sm:$0x3] %vm359, %v528
    %532 = vst [vmem:[#allocation1] ss:$4 sm:$0xff] %v523
    %v533 = vld.sshfl [vmem:[#allocation1] sm:$0xff pattern:$0x73625140]
    %534 = vrot.lane.b32.xlu0 %v533, 64
    %v535 = vpop.permute.xlu0 %534
    %s537 = scalar_lea.vmem [#allocation11], 10
    %538 = vst.msk [vmem:[%s537] sm:$0x3] %vm367, %v535
    %s539 = scalar_lea.vmem [#allocation2], 12
    %v540 = vld [vmem:[%s539] sm:$0xf]
    %v541 = vpack.c.bf16 %v523, %v523
    %543 = vrot.lane.b32.xlu0 %v541, 64
    %v544 = vpop.permute.xlu0 %543
    %v546 = vsel %vm288, %v544, 0
    %548 = vmatpush.bf16.msra.mxu0 0
    %549 = vmatpush.bf16.msra.mxu0 0
    %550 = vmatpush.bf16.msra.mxu0 0
    %551 = vmatpush.bf16.msra.mxu0 0
    %552 = vmatpush.bf16.msra.mxu0 %v278
    %553 = vmatpush.bf16.msra.mxu0 %v276
    %554 = vmatpush.bf16.msra.mxu0 %v274
    %555 = vmatpush.bf16.msra.mxu0 %v272
    %556 = vmatmul.bf16.gmra.mxu0 %v546
    %v557 = vpop.f32.mrf.mxu0
    %v558 = vadd.f32 0.0, %v557
    %v559 = vpop.f32.mrf.mxu0
    %560 = vdwg.mxu0
    %561 = vmatpush.bf16.msra.mxu0 0
    %562 = vmatpush.bf16.msra.mxu0 0
    %563 = vmatpush.bf16.msra.mxu0 0
    %564 = vmatpush.bf16.msra.mxu0 0
    %565 = vmatpush.bf16.msra.mxu0 %v279
    %566 = vmatpush.bf16.msra.mxu0 %v277
    %567 = vmatpush.bf16.msra.mxu0 %v275
    %568 = vmatpush.bf16.msra.mxu0 %v273
    %569 = vmatmul.bf16.gmra.mxu0 %v546
    %v570 = vpop.f32.mrf.mxu0
    %v571 = vadd.f32 0.0, %v570
    %v572 = vpop.f32.mrf.mxu0
    %573 = vdwg.mxu0
    %v574 = vadd.f32 %v540, %v558
    %v575 = vxor.u32 %v574, 2147483648
    %v576 = vmul.f32 %v575, 1.442695
    %v577 = vpow.pop %v576
    %v578 = vadd.f32 %v577, 1.0
    %v579 = vrcp.pop %v578
    %v580 = vmul.f32 %v578, %v579
    %v581 = vsub.f32 1.0, %v580
    %v582 = vmul.f32 %v579, %v581
    %v583 = vadd.f32 %v579, %v582
    %vm584 = vweird.f32 %v578
    %vm585 = vweird.f32 %v579
    %vm586 = vmor %vm584, %vm585
    %v587 = vsel %vm586, %v579, %v583
    %v588 = vand.u32 2147483647, %v578
    %vm589 = vcmp.eq.f32.partialorder %v588, 8.507059e+37
    %v590 = vand.u32 %v578, 2147483648
    %v591 = vor.u32 1.1754944e-38, %v590
    %v592 = vsel %vm589, %v591, %v587
    %v593 = vmul.f32 1.0, %v592
    %v594 = vadd.f32 %v571, %v245
    %v595 = vmul.f32 %v593, %v594
    %v597 = vrot.slane %v540, 2
    %v599 = vadd.f32 %v597, %v595
    %v600 = vtanh.pop %v599
    %v601 = vsub.f32 1.0, %v593
    %603 = vrot.lane.b32.xlu0 %v600, 64
    %v604 = vpop.permute.xlu0 %603
    %v606 = vmul.f32 %v601, %v604
    %v607 = vmul.f32 %v593, %v523
    %v608 = vadd.f32 %v606, %v607
    %610 = vst [vmem:[#allocation1] ss:$4 sm:$0xff] %v608
    %v611 = vld.sshfl [vmem:[#allocation1] sm:$0xff pattern:$0x73625140]
    %612 = vrot.lane.b32.xlu0 %v611, 64
    %v613 = vpop.permute.xlu0 %612
    %s615 = scalar_lea.vmem [#allocation11], 6
    %616 = vst.msk [vmem:[%s615] sm:$0x3] %vm359, %v613
    %617 = vst [vmem:[#allocation1] ss:$4 sm:$0xff] %v608
    %v618 = vld.sshfl [vmem:[#allocation1] sm:$0xff pattern:$0x73625140]
    %619 = vrot.lane.b32.xlu0 %v618, 64
    %v620 = vpop.permute.xlu0 %619
    %s622 = scalar_lea.vmem [#allocation11], 8
    %623 = vst.msk [vmem:[%s622] sm:$0x3] %vm367, %v620
    %s624 = scalar_lea.vmem [#allocation2], 16
    %v625 = vld [vmem:[%s624] sm:$0xf]
    %v626 = vpack.c.bf16 %v608, %v608
    %628 = vrot.lane.b32.xlu0 %v626, 64
    %v629 = vpop.permute.xlu0 %628
    %v631 = vsel %vm288, %v629, 0
    %633 = vmatpush.bf16.msra.mxu0 0
    %634 = vmatpush.bf16.msra.mxu0 0
    %635 = vmatpush.bf16.msra.mxu0 0
    %636 = vmatpush.bf16.msra.mxu0 0
    %637 = vmatpush.bf16.msra.mxu0 %v278
    %638 = vmatpush.bf16.msra.mxu0 %v276
    %639 = vmatpush.bf16.msra.mxu0 %v274
    %640 = vmatpush.bf16.msra.mxu0 %v272
    %641 = vmatmul.bf16.gmra.mxu0 %v631
    %v642 = vpop.f32.mrf.mxu0
    %v643 = vadd.f32 0.0, %v642
    %v644 = vpop.f32.mrf.mxu0
    %645 = vdwg.mxu0
    %646 = vmatpush.bf16.msra.mxu0 0
    %647 = vmatpush.bf16.msra.mxu0 0
    %648 = vmatpush.bf16.msra.mxu0 0
    %649 = vmatpush.bf16.msra.mxu0 0
    %650 = vmatpush.bf16.msra.mxu0 %v279
    %651 = vmatpush.bf16.msra.mxu0 %v277
    %652 = vmatpush.bf16.msra.mxu0 %v275
    %653 = vmatpush.bf16.msra.mxu0 %v273
    %654 = vmatmul.bf16.gmra.mxu0 %v631
    %v655 = vpop.f32.mrf.mxu0
    %v656 = vadd.f32 0.0, %v655
    %v657 = vpop.f32.mrf.mxu0
    %658 = vdwg.mxu0
    %v659 = vadd.f32 %v625, %v643
    %v660 = vxor.u32 %v659, 2147483648
    %v661 = vmul.f32 %v660, 1.442695
    %v662 = vpow.pop %v661
    %v663 = vadd.f32 %v662, 1.0
    %v664 = vrcp.pop %v663
    %v665 = vmul.f32 %v663, %v664
    %v666 = vsub.f32 1.0, %v665
    %v667 = vmul.f32 %v664, %v666
    %v668 = vadd.f32 %v664, %v667
    %vm669 = vweird.f32 %v663
    %vm670 = vweird.f32 %v664
    %vm671 = vmor %vm669, %vm670
    %v672 = vsel %vm671, %v664, %v668
    %v673 = vand.u32 2147483647, %v663
    %vm674 = vcmp.eq.f32.partialorder %v673, 8.507059e+37
    %v675 = vand.u32 %v663, 2147483648
    %v676 = vor.u32 1.1754944e-38, %v675
    %v677 = vsel %vm674, %v676, %v672
    %v678 = vmul.f32 1.0, %v677
    %v679 = vadd.f32 %v656, %v245
    %v680 = vmul.f32 %v678, %v679
    %v682 = vrot.slane %v625, 2
    %v684 = vadd.f32 %v682, %v680
    %v685 = vtanh.pop %v684
    %v686 = vsub.f32 1.0, %v678
    %688 = vrot.lane.b32.xlu0 %v685, 64
    %v689 = vpop.permute.xlu0 %688
    %v691 = vmul.f32 %v686, %v689
    %v692 = vmul.f32 %v678, %v608
    %v693 = vadd.f32 %v691, %v692
    %695 = vst [vmem:[#allocation1] ss:$4 sm:$0xff] %v693
    %v696 = vld.sshfl [vmem:[#allocation1] sm:$0xff pattern:$0x73625140]
    %697 = vrot.lane.b32.xlu0 %v696, 64
    %v698 = vpop.permute.xlu0 %697
    %700 = vst.msk [vmem:[%s622] sm:$0x3] %vm359, %v698
    %701 = vst [vmem:[#allocation1] ss:$4 sm:$0xff] %v693
    %v702 = vld.sshfl [vmem:[#allocation1] sm:$0xff pattern:$0x73625140]
    %703 = vrot.lane.b32.xlu0 %v702, 64
    %v704 = vpop.permute.xlu0 %703
    %706 = vst.msk [vmem:[%s615] sm:$0x3] %vm367, %v704
    %s707 = scalar_lea.vmem [#allocation2], 20
    %v708 = vld [vmem:[%s707] sm:$0xf]
    %v709 = vpack.c.bf16 %v693, %v693
    %711 = vrot.lane.b32.xlu0 %v709, 64
    %v712 = vpop.permute.xlu0 %711
    %v714 = vsel %vm288, %v712, 0
    %716 = vmatpush.bf16.msra.mxu0 0
    %717 = vmatpush.bf16.msra.mxu0 0
    %718 = vmatpush.bf16.msra.mxu0 0
    %719 = vmatpush.bf16.msra.mxu0 0
    %720 = vmatpush.bf16.msra.mxu0 %v278
    %721 = vmatpush.bf16.msra.mxu0 %v276
    %722 = vmatpush.bf16.msra.mxu0 %v274
    %723 = vmatpush.bf16.msra.mxu0 %v272
    %724 = vmatmul.bf16.gmra.mxu0 %v714
    %v725 = vpop.f32.mrf.mxu0
    %v726 = vadd.f32 0.0, %v725
    %v727 = vpop.f32.mrf.mxu0
    %728 = vdwg.mxu0
    %729 = vmatpush.bf16.msra.mxu0 0
    %730 = vmatpush.bf16.msra.mxu0 0
    %731 = vmatpush.bf16.msra.mxu0 0
    %732 = vmatpush.bf16.msra.mxu0 0
    %733 = vmatpush.bf16.msra.mxu0 %v279
    %734 = vmatpush.bf16.msra.mxu0 %v277
    %735 = vmatpush.bf16.msra.mxu0 %v275
    %736 = vmatpush.bf16.msra.mxu0 %v273
    %737 = vmatmul.bf16.gmra.mxu0 %v714
    %v738 = vpop.f32.mrf.mxu0
    %v739 = vadd.f32 0.0, %v738
    %v740 = vpop.f32.mrf.mxu0
    %741 = vdwg.mxu0
    %v742 = vadd.f32 %v708, %v726
    %v743 = vxor.u32 %v742, 2147483648
    %v744 = vmul.f32 %v743, 1.442695
    %v745 = vpow.pop %v744
    %v746 = vadd.f32 %v745, 1.0
    %v747 = vrcp.pop %v746
    %v748 = vmul.f32 %v746, %v747
    %v749 = vsub.f32 1.0, %v748
    %v750 = vmul.f32 %v747, %v749
    %v751 = vadd.f32 %v747, %v750
    %vm752 = vweird.f32 %v746
    %vm753 = vweird.f32 %v747
    %vm754 = vmor %vm752, %vm753
    %v755 = vsel %vm754, %v747, %v751
    %v756 = vand.u32 2147483647, %v746
    %vm757 = vcmp.eq.f32.partialorder %v756, 8.507059e+37
    %v758 = vand.u32 %v746, 2147483648
    %v759 = vor.u32 1.1754944e-38, %v758
    %v760 = vsel %vm757, %v759, %v755
    %v761 = vmul.f32 1.0, %v760
    %v762 = vadd.f32 %v739, %v245
    %v763 = vmul.f32 %v761, %v762
    %v765 = vrot.slane %v708, 2
    %v767 = vadd.f32 %v765, %v763
    %v768 = vtanh.pop %v767
    %v769 = vsub.f32 1.0, %v761
    %771 = vrot.lane.b32.xlu0 %v768, 64
    %v772 = vpop.permute.xlu0 %771
    %v774 = vmul.f32 %v769, %v772
    %v775 = vmul.f32 %v761, %v693
    %v776 = vadd.f32 %v774, %v775
    %778 = vst [vmem:[#allocation1] ss:$4 sm:$0xff] %v776
    %v779 = vld.sshfl [vmem:[#allocation1] sm:$0xff pattern:$0x73625140]
    %780 = vrot.lane.b32.xlu0 %v779, 64
    %v781 = vpop.permute.xlu0 %780
    %783 = vst.msk [vmem:[%s537] sm:$0x3] %vm359, %v781
    %784 = vst [vmem:[#allocation1] ss:$4 sm:$0xff] %v776
    %v785 = vld.sshfl [vmem:[#allocation1] sm:$0xff pattern:$0x73625140]
    %786 = vrot.lane.b32.xlu0 %v785, 64
    %v787 = vpop.permute.xlu0 %786
    %789 = vst.msk [vmem:[%s530] sm:$0x3] %vm367, %v787
    %s790 = scalar_lea.vmem [#allocation2], 24
    %v791 = vld [vmem:[%s790] sm:$0xf]
    %v792 = vpack.c.bf16 %v776, %v776
    %794 = vrot.lane.b32.xlu0 %v792, 64
    %v795 = vpop.permute.xlu0 %794
    %v797 = vsel %vm288, %v795, 0
    %799 = vmatpush.bf16.msra.mxu0 0
    %800 = vmatpush.bf16.msra.mxu0 0
    %801 = vmatpush.bf16.msra.mxu0 0
    %802 = vmatpush.bf16.msra.mxu0 0
    %803 = vmatpush.bf16.msra.mxu0 %v278
    %804 = vmatpush.bf16.msra.mxu0 %v276
    %805 = vmatpush.bf16.msra.mxu0 %v274
    %806 = vmatpush.bf16.msra.mxu0 %v272
    %807 = vmatmul.bf16.gmra.mxu0 %v797
    %v808 = vpop.f32.mrf.mxu0
    %v809 = vadd.f32 0.0, %v808
    %v810 = vpop.f32.mrf.mxu0
    %811 = vdwg.mxu0
    %812 = vmatpush.bf16.msra.mxu0 0
    %813 = vmatpush.bf16.msra.mxu0 0
    %814 = vmatpush.bf16.msra.mxu0 0
    %815 = vmatpush.bf16.msra.mxu0 0
    %816 = vmatpush.bf16.msra.mxu0 %v279
    %817 = vmatpush.bf16.msra.mxu0 %v277
    %818 = vmatpush.bf16.msra.mxu0 %v275
    %819 = vmatpush.bf16.msra.mxu0 %v273
    %820 = vmatmul.bf16.gmra.mxu0 %v797
    %v821 = vpop.f32.mrf.mxu0
    %v822 = vadd.f32 0.0, %v821
    %v823 = vpop.f32.mrf.mxu0
    %824 = vdwg.mxu0
    %v825 = vadd.f32 %v791, %v809
    %v826 = vxor.u32 %v825, 2147483648
    %v827 = vmul.f32 %v826, 1.442695
    %v828 = vpow.pop %v827
    %v829 = vadd.f32 %v828, 1.0
    %v830 = vrcp.pop %v829
    %v831 = vmul.f32 %v829, %v830
    %v832 = vsub.f32 1.0, %v831
    %v833 = vmul.f32 %v830, %v832
    %v834 = vadd.f32 %v830, %v833
    %vm835 = vweird.f32 %v829
    %vm836 = vweird.f32 %v830
    %vm837 = vmor %vm835, %vm836
    %v838 = vsel %vm837, %v830, %v834
    %v839 = vand.u32 2147483647, %v829
    %vm840 = vcmp.eq.f32.partialorder %v839, 8.507059e+37
    %v841 = vand.u32 %v829, 2147483648
    %v842 = vor.u32 1.1754944e-38, %v841
    %v843 = vsel %vm840, %v842, %v838
    %v844 = vmul.f32 1.0, %v843
    %v845 = vadd.f32 %v822, %v245
    %v846 = vmul.f32 %v844, %v845
    %v848 = vrot.slane %v791, 2
    %v850 = vadd.f32 %v848, %v846
    %v851 = vtanh.pop %v850
    %v852 = vsub.f32 1.0, %v844
    %854 = vrot.lane.b32.xlu0 %v851, 64
    %v855 = vpop.permute.xlu0 %854
    %v857 = vmul.f32 %v852, %v855
    %v858 = vmul.f32 %v844, %v776
    %v859 = vadd.f32 %v857, %v858
    %861 = vst [vmem:[#allocation1] ss:$4 sm:$0xff] %v859
    %v862 = vld.sshfl [vmem:[#allocation1] sm:$0xff pattern:$0x73625140]
    %863 = vrot.lane.b32.xlu0 %v862, 64
    %v864 = vpop.permute.xlu0 %863
    %866 = vst.msk [vmem:[%s452] sm:$0x3] %vm359, %v864
    %867 = vst [vmem:[#allocation1] ss:$4 sm:$0xff] %v859
    %v868 = vld.sshfl [vmem:[#allocation1] sm:$0xff pattern:$0x73625140]
    %869 = vrot.lane.b32.xlu0 %v868, 64
    %v870 = vpop.permute.xlu0 %869
    %872 = vst.msk [vmem:[%s445] sm:$0x3] %vm367, %v870
    %s873 = scalar_lea.vmem [#allocation2], 28
    %v874 = vld [vmem:[%s873] sm:$0xf]
    %v875 = vpack.c.bf16 %v859, %v859
    %877 = vrot.lane.b32.xlu0 %v875, 64
    %v878 = vpop.permute.xlu0 %877
    %v880 = vsel %vm288, %v878, 0
    %882 = vmatpush.bf16.msra.mxu0 0
    %883 = vmatpush.bf16.msra.mxu0 0
    %884 = vmatpush.bf16.msra.mxu0 0
    %885 = vmatpush.bf16.msra.mxu0 0
    %886 = vmatpush.bf16.msra.mxu0 %v278
    %887 = vmatpush.bf16.msra.mxu0 %v276
    %888 = vmatpush.bf16.msra.mxu0 %v274
    %889 = vmatpush.bf16.msra.mxu0 %v272
    %890 = vmatmul.bf16.gmra.mxu0 %v880
    %v891 = vpop.f32.mrf.mxu0
    %v892 = vadd.f32 0.0, %v891
    %v893 = vpop.f32.mrf.mxu0
    %894 = vdwg.mxu0
    %895 = vmatpush.bf16.msra.mxu0 0
    %896 = vmatpush.bf16.msra.mxu0 0
    %897 = vmatpush.bf16.msra.mxu0 0
    %898 = vmatpush.bf16.msra.mxu0 0
    %899 = vmatpush.bf16.msra.mxu0 %v279
    %900 = vmatpush.bf16.msra.mxu0 %v277
    %901 = vmatpush.bf16.msra.mxu0 %v275
    %902 = vmatpush.bf16.msra.mxu0 %v273
    %903 = vmatmul.bf16.gmra.mxu0 %v880
    %v904 = vpop.f32.mrf.mxu0
    %v905 = vadd.f32 0.0, %v904
    %v906 = vpop.f32.mrf.mxu0
    %907 = vdwg.mxu0
    %v908 = vadd.f32 %v874, %v892
    %v909 = vxor.u32 %v908, 2147483648
    %v910 = vmul.f32 %v909, 1.442695
    %v911 = vpow.pop %v910
    %v912 = vadd.f32 %v911, 1.0
    %v913 = vrcp.pop %v912
    %v914 = vmul.f32 %v912, %v913
    %v915 = vsub.f32 1.0, %v914
    %v916 = vmul.f32 %v913, %v915
    %v917 = vadd.f32 %v913, %v916
    %vm918 = vweird.f32 %v912
    %vm919 = vweird.f32 %v913
    %vm920 = vmor %vm918, %vm919
    %v921 = vsel %vm920, %v913, %v917
    %v922 = vand.u32 2147483647, %v912
    %vm923 = vcmp.eq.f32.partialorder %v922, 8.507059e+37
    %v924 = vand.u32 %v912, 2147483648
    %v925 = vor.u32 1.1754944e-38, %v924
    %v926 = vsel %vm923, %v925, %v921
    %v927 = vmul.f32 1.0, %v926
    %v928 = vadd.f32 %v905, %v245
    %v929 = vmul.f32 %v927, %v928
    %v931 = vrot.slane %v874, 2
    %v933 = vadd.f32 %v931, %v929
    %v934 = vtanh.pop %v933
    %v935 = vsub.f32 1.0, %v927
    %937 = vrot.lane.b32.xlu0 %v934, 64
    %v938 = vpop.permute.xlu0 %937
    %v940 = vmul.f32 %v935, %v938
    %v941 = vmul.f32 %v927, %v859
    %v942 = vadd.f32 %v940, %v941
    %944 = vst [vmem:[#allocation1] ss:$4 sm:$0xff] %v942
    %v945 = vld.sshfl [vmem:[#allocation1] sm:$0xff pattern:$0x73625140]
    %946 = vrot.lane.b32.xlu0 %v945, 64
    %v947 = vpop.permute.xlu0 %946
    %949 = vst.msk [vmem:[%s366] sm:$0x3] %vm359, %v947
    %950 = vst [vmem:[#allocation1] ss:$4 sm:$0xff] %v942
    %v951 = vld.sshfl [vmem:[#allocation1] sm:$0xff pattern:$0x73625140]
    %952 = vrot.lane.b32.xlu0 %v951, 64
    %v953 = vpop.permute.xlu0 %952
    %955 = vst.msk [vmem:[#allocation11] sm:$0x3] %vm367, %v953
    // Predicated region
    $region38: #{tpu_custom_call.1} parent=1 // pred_check
      _
    $region39: #{tpu_custom_call.1} parent=1 // pred_check_branch
      %957 = sbr.rel (0) target = $region41
    $region40: #{tpu_custom_call.1} parent=1 // pred_region
      %959 = vsyncadd [#allocation5], 0
      %s960 = sshll.u32 [#allocation11], 4
      %s961 = int_to_ptr.vmem [resolvable:$true] %s960
      %s962 = sshll.u32 %s5, 4
      %s963 = int_to_ptr.hbm [resolvable:$true] %s962
      %968 = dma.vmem_to_hbm [thread:$0]  %s961, 256, %s963, [#allocation5], 32, 32, 2
    $region41: #{tpu_custom_call.1} parent=1 // pred_fallthru
      _
    // Predicated region
    $region42: #{tpu_custom_call.1} parent=1 // pred_check
      _
    $region43: #{tpu_custom_call.1} parent=1 // pred_check_branch
      %970 = sbr.rel (0) target = $region45
    $region44: #{tpu_custom_call.1} parent=1 // pred_region
      %972 = dma.done [#allocation5], 256
    $region45: #{tpu_custom_call.1} parent=1 // pred_fallthru
      _
    %973 = vsyncpa [#allocation4], 1
    %974 = vsyncpa [#allocation7], 1
    %975 = vsyncpa [#allocation10], 1
    %976 = vsyncpa [#allocation5], 1

</llo_original>
